<compile_context>
chip_gen: v5e
topology: v5e:2x2
jax: 0.10.0
libtpu: 0.0.40
codegen_flags: <defaults>
</compile_context>

<pallas_src>
import functools

import jax
import jax.numpy as jnp
from jax.experimental import pallas as pl
from jax.experimental.pallas import tpu as pltpu

_H1 = 400          # torch hidden 1
_H1P = 512         # padded (lane-aligned) hidden 1
_H2 = 300          # hidden 2


def _round_up(x, m):
    return ((x + m - 1) // m) * m


def _ensemble_critic_kernel(
    s_ref,       # (TB, Ds)       f32    state tile (pipelined)
    a_ref,       # (TB, Da)       f32    action tile (pipelined)
    ws_ref,      # (Ds, 1024)     bf16   state rows of [w1 | w4] (zero-padded to 512 cols each)
    wa_ref,      # (Da, 1024)     bf16   action rows of [w1 | w4]
    b14_ref,     # (1, 1024)      f32    [b1 pad | b4 pad]
    w2_ref,      # (512, 300)     bf16   rows 400:512 are zero
    b2_ref,      # (1, 300)       f32
    w5_ref,      # (512, 300)     bf16
    b5_ref,      # (1, 300)       f32
    w36_ref,     # (2, 300)       f32    row0 = w3^T, row1 = w6^T
    b36_ref,     # (1, 2)         f32    [b3, b6]
    out_ref,     # (TB, 128)      f32    lane0=q1, lane1=q2, lane2=std
):
    s = s_ref[...].astype(jnp.bfloat16)
    a = a_ref[...].astype(jnp.bfloat16)

    # ---- fused first layer for both heads; concat fused as split-K matmuls -----
    y = jnp.dot(s, ws_ref[...], preferred_element_type=jnp.float32)
    y = y + jnp.dot(a, wa_ref[...], preferred_element_type=jnp.float32)
    y = jnp.maximum(y + b14_ref[...], 0.0)                          # f32 relu
    h = y[:, :_H1P].astype(jnp.bfloat16)                            # head 1 (lane-aligned split)
    g = y[:, _H1P:].astype(jnp.bfloat16)                            # head 2

    # ---- second layers ----------------------------------------------------------
    h2 = jnp.dot(h, w2_ref[...], preferred_element_type=jnp.float32)
    h2 = jnp.maximum(h2 + b2_ref[...], 0.0)
    g2 = jnp.dot(g, w5_ref[...], preferred_element_type=jnp.float32)
    g2 = jnp.maximum(g2 + b5_ref[...], 0.0)

    # ---- final N=1 layers as VPU multiply + lane reduction (no MXU) -------------
    w36 = w36_ref[...]                                              # (2, 300) f32
    b36 = b36_ref[...]                                              # (1, 2)   f32
    q1 = jnp.sum(h2 * w36[0:1, :], axis=-1, keepdims=True) + b36[:, 0:1]
    q2 = jnp.sum(g2 * w36[1:2, :], axis=-1, keepdims=True) + b36[:, 1:2]

    # population std over the 2-member ensemble: |q1 - q2| / 2
    std = jnp.abs(q1 - q2) * 0.5

    # ---- lane-dense packed output (unmasked full-width stores) ------------------
    lane = jax.lax.broadcasted_iota(jnp.int32, out_ref.shape, 1)
    out = jnp.where(lane == 0, q1,
          jnp.where(lane == 1, q2,
          jnp.where(lane == 2, std, 0.0)))
    out_ref[...] = out.astype(out_ref.dtype)


def prepare_params(params, state_dim):
    """One-time weight repacking (do NOT call per step): pad / fuse / split / cast."""
    (w1, b1, w2, b2, w3, b3, w4, b4, w5, b5, w6, b6) = params
    in_dim = w1.shape[0]

    def pad_cols(w, b):
        wp = jnp.zeros((in_dim, _H1P), w.dtype).at[:, :_H1].set(w)
        bp = jnp.zeros((_H1P,), b.dtype).at[:_H1].set(b)
        return wp, bp

    w1p, b1p = pad_cols(w1, b1)
    w4p, b4p = pad_cols(w4, b4)
    w14 = jnp.concatenate([w1p, w4p], axis=1)                           # (in, 1024)
    ws = w14[:state_dim, :].astype(jnp.bfloat16)                        # state rows
    wa = w14[state_dim:, :].astype(jnp.bfloat16)                        # action rows
    b14 = jnp.concatenate([b1p, b4p], axis=0)[None, :].astype(jnp.float32)

    w2p = jnp.zeros((_H1P, _H2), w2.dtype).at[:_H1, :].set(w2).astype(jnp.bfloat16)
    w5p = jnp.zeros((_H1P, _H2), w5.dtype).at[:_H1, :].set(w5).astype(jnp.bfloat16)
    b2r = b2[None, :].astype(jnp.float32)
    b5r = b5[None, :].astype(jnp.float32)

    w36 = jnp.concatenate([w3.T, w6.T], axis=0).astype(jnp.float32)     # (2, 300)
    b36 = jnp.concatenate([b3, b6], axis=0)[None, :].astype(jnp.float32)  # (1, 2)
    return (ws, wa, b14, w2p, b2r, w5p, b5r, w36, b36)


@functools.partial(jax.jit, static_argnames=("with_var",))
def ensemble_critic_forward(state, action, prep, with_var=False):
    """Forward pass of EnsembleCritic (num_qs=2). Returns all_qs (2,B,1) [, std (B,1)]."""
    B, Ds = state.shape
    Da = action.shape[1]
    (ws, wa, b14, w2p, b2r, w5p, b5r, w36, b36) = prep

    # Batch tile: cap at 512 (big enough to hide DMA, fits v7x's 64 MiB VMEM),
    # and minimize padding waste for arbitrary B.
    n_tiles = max(1, pl.cdiv(B, 512))
    TB = max(8, _round_up(-(-B // n_tiles), 8))
    Bp = _round_up(B, TB)
    if Bp != B:
        state = jnp.pad(state, ((0, Bp - B), (0, 0)))
        action = jnp.pad(action, ((0, Bp - B), (0, 0)))
    grid = (Bp // TB,)

    resident = lambda arr: pl.BlockSpec(arr.shape, lambda i: (0, 0))

    out = pl.pallas_call(
        _ensemble_critic_kernel,
        out_shape=jax.ShapeDtypeStruct((Bp, 128), jnp.float32),
        grid=grid,
        in_specs=[
            pl.BlockSpec((TB, Ds), lambda i: (i, 0)),   # state: pipelined batch tile
            pl.BlockSpec((TB, Da), lambda i: (i, 0)),   # action: pipelined batch tile
            resident(ws), resident(wa), resident(b14),
            resident(w2p), resident(b2r),
            resident(w5p), resident(b5r),
            resident(w36), resident(b36),
        ],
        out_specs=pl.BlockSpec((TB, 128), lambda i: (i, 0)),
        compiler_params=pltpu.CompilerParams(
            dimension_semantics=("parallel",),          # megacore sharding
        ),
    )(state, action, ws, wa, b14, w2p, b2r, w5p, b5r, w36, b36)

    q1 = out[:B, 0:1]
    q2 = out[:B, 1:2]
    all_qs = jnp.stack([q1, q2], axis=0)                # (2, B, 1)
    if with_var:
        return all_qs, out[:B, 2:3]
    return all_qs


def init_params(key, state_dim, action_dim):
    """PyTorch-Linear-style init: U(-1/sqrt(fan_in), 1/sqrt(fan_in)); stored (in, out)."""
    in_dim = state_dim + action_dim
    dims = [
        (in_dim, _H1), (_H1, _H2), (_H2, 1),   # l1, l2, l3
        (in_dim, _H1), (_H1, _H2), (_H2, 1),   # l4, l5, l6
    ]
    params = []
    for fan_in, fan_out in dims:
        key, kw, kb = jax.random.split(key, 3)
        bound = 1.0 / jnp.sqrt(jnp.float32(fan_in))
        w = jax.random.uniform(kw, (fan_in, fan_out), jnp.float32, -bound, bound)
        b = jax.random.uniform(kb, (fan_out,), jnp.float32, -bound, bound)
        params += [w, b]
    return tuple(params)


def _reference_forward(state, action, params, with_var=False):
    """Pure-JAX reference mirroring the kernel's numerics (bf16 MXU inputs, f32 acc)."""
    x = jnp.concatenate([state, action], axis=1)
    (w1, b1, w2, b2, w3, b3, w4, b4, w5, b5, w6, b6) = params
    bf = lambda a: a.astype(jnp.bfloat16)

    def head(wa, ba, wb, bb, wc, bc):
        h = jnp.dot(bf(x), bf(wa), preferred_element_type=jnp.float32) + ba
        h = jnp.maximum(h, 0.0)
        h = jnp.dot(bf(h), bf(wb), preferred_element_type=jnp.float32) + bb
        h = jnp.maximum(h, 0.0)
        return jnp.sum(h * wc.T, axis=-1, keepdims=True) + bc

    q1 = head(w1, b1, w2, b2, w3, b3)
    q2 = head(w4, b4, w5, b5, w6, b6)
    all_qs = jnp.stack([q1, q2], axis=0)
    if with_var:
        return all_qs, jnp.std(all_qs, axis=0)
    return all_qs


if __name__ == "__main__":
    batch, state_dim, action_dim = 8, 12, 4

    key = jax.random.PRNGKey(0)
    key, ks, ka, kp = jax.random.split(key, 4)
    state = jax.random.normal(ks, (batch, state_dim), jnp.float32)
    action = jax.random.normal(ka, (batch, action_dim), jnp.float32)
    params = init_params(kp, state_dim, action_dim)
    prep = prepare_params(params, state_dim)   # one-time repack; reusable across steps

    # forward(state, action) -> all_qs of shape (2, B, 1)
    all_qs = ensemble_critic_forward(state, action, prep, with_var=False)
    jax.block_until_ready(all_qs)

    # forward(state, action, with_var=True) -> (all_qs, std_q)
    all_qs_v, std_q = ensemble_critic_forward(state, action, prep, with_var=True)
    jax.block_until_ready((all_qs_v, std_q))

    ref_all, ref_std = _reference_forward(state, action, params, with_var=True)
    assert all_qs.shape == (2, batch, 1)
    assert std_q.shape == (batch, 1)
    assert jnp.allclose(all_qs, ref_all, atol=1e-2, rtol=1e-2)
    assert jnp.allclose(all_qs_v, ref_all, atol=1e-2, rtol=1e-2)
    assert jnp.allclose(std_q, ref_std, atol=1e-2, rtol=1e-2)

    # Also exercise the multi-step batch grid + padding path (B not a multiple of TB).
    kb1, kb2 = jax.random.split(key)
    state_b = jax.random.normal(kb1, (600, state_dim), jnp.float32)
    action_b = jax.random.normal(kb2, (600, action_dim), jnp.float32)
    all_b, std_b = ensemble_critic_forward(state_b, action_b, prep, with_var=True)
    jax.block_until_ready((all_b, std_b))
    ref_all_b, ref_std_b = _reference_forward(state_b, action_b, params, with_var=True)
    assert all_b.shape == (2, 600, 1) and std_b.shape == (600, 1)
    assert jnp.allclose(all_b, ref_all_b, atol=1e-2, rtol=1e-2)
    assert jnp.allclose(std_b, ref_std_b, atol=1e-2, rtol=1e-2)

    print("KERNEL_OK")
</pallas_src>

<mosaic_0001>
module attributes {stable_mosaic.version = 11 : i64} {
  func.func @_ensemble_critic_kernel(%arg0: i32, %arg1: memref<8x12xf32, #tpu.memory_space<vmem>>, %arg2: memref<8x4xf32, #tpu.memory_space<vmem>>, %arg3: memref<12x1024xbf16, #tpu.memory_space<vmem>>, %arg4: memref<4x1024xbf16, #tpu.memory_space<vmem>>, %arg5: memref<1x1024xf32, #tpu.memory_space<vmem>>, %arg6: memref<512x300xbf16, #tpu.memory_space<vmem>>, %arg7: memref<1x300xf32, #tpu.memory_space<vmem>>, %arg8: memref<512x300xbf16, #tpu.memory_space<vmem>>, %arg9: memref<1x300xf32, #tpu.memory_space<vmem>>, %arg10: memref<2x300xf32, #tpu.memory_space<vmem>>, %arg11: memref<1x2xf32, #tpu.memory_space<vmem>>, %arg12: memref<8x128xf32, #tpu.memory_space<vmem>>) attributes {dimension_semantics = [#tpu.dimension_semantics<parallel>], iteration_bounds = array<i64: 1>, scalar_prefetch = 0 : i64, scratch_operands = 0 : i64, tpu.core_type = #tpu.core_type<tc>, window_params = [{transform_indices = @transform_0, window_bounds = array<i64: 8, 12>}, {transform_indices = @transform_1, window_bounds = array<i64: 8, 4>}, {pipeline_mode = #tpu.pipeline_mode<synchronous>, transform_indices = @transform_2, window_bounds = array<i64: 12, 1024>}, {pipeline_mode = #tpu.pipeline_mode<synchronous>, transform_indices = @transform_3, window_bounds = array<i64: 4, 1024>}, {pipeline_mode = #tpu.pipeline_mode<synchronous>, transform_indices = @transform_4, window_bounds = array<i64: 1, 1024>}, {pipeline_mode = #tpu.pipeline_mode<synchronous>, transform_indices = @transform_5, window_bounds = array<i64: 512, 300>}, {pipeline_mode = #tpu.pipeline_mode<synchronous>, transform_indices = @transform_6, window_bounds = array<i64: 1, 300>}, {pipeline_mode = #tpu.pipeline_mode<synchronous>, transform_indices = @transform_7, window_bounds = array<i64: 512, 300>}, {pipeline_mode = #tpu.pipeline_mode<synchronous>, transform_indices = @transform_8, window_bounds = array<i64: 1, 300>}, {pipeline_mode = #tpu.pipeline_mode<synchronous>, transform_indices = @transform_9, window_bounds = array<i64: 2, 300>}, {pipeline_mode = #tpu.pipeline_mode<synchronous>, transform_indices = @transform_10, window_bounds = array<i64: 1, 2>}, {transform_indices = @transform_11, window_bounds = array<i64: 8, 128>}]} {
    %c0 = arith.constant 0 : index
    %c0_0 = arith.constant 0 : index
    %0 = vector.load %arg1[%c0, %c0_0] : memref<8x12xf32, #tpu.memory_space<vmem>>, vector<8x12xf32>
    %1 = arith.truncf %0 : vector<8x12xf32> to vector<8x12xbf16>
    %c0_1 = arith.constant 0 : index
    %c0_2 = arith.constant 0 : index
    %2 = vector.load %arg2[%c0_1, %c0_2] : memref<8x4xf32, #tpu.memory_space<vmem>>, vector<8x4xf32>
    %3 = arith.truncf %2 : vector<8x4xf32> to vector<8x4xbf16>
    %c0_3 = arith.constant 0 : index
    %c0_4 = arith.constant 0 : index
    %4 = vector.load %arg3[%c0_3, %c0_4] : memref<12x1024xbf16, #tpu.memory_space<vmem>>, vector<12x1024xbf16>
    %cst = arith.constant dense<0.000000e+00> : vector<8x1024xf32>
    %5 = tpu.matmul %1, %4, %cst {dimension_numbers = #tpu.dot_dimension_numbers<[1], [0], [0], [1], [0, 0, 1, 1], [], []>} : vector<8x12xbf16>, vector<12x1024xbf16>, vector<8x1024xf32> -> vector<8x1024xf32>
    %c0_5 = arith.constant 0 : index
    %c0_6 = arith.constant 0 : index
    %6 = vector.load %arg4[%c0_5, %c0_6] : memref<4x1024xbf16, #tpu.memory_space<vmem>>, vector<4x1024xbf16>
    %cst_7 = arith.constant dense<0.000000e+00> : vector<8x1024xf32>
    %7 = tpu.matmul %3, %6, %cst_7 {dimension_numbers = #tpu.dot_dimension_numbers<[1], [0], [0], [1], [0, 0, 1, 1], [], []>} : vector<8x4xbf16>, vector<4x1024xbf16>, vector<8x1024xf32> -> vector<8x1024xf32>
    %8 = arith.addf %5, %7 : vector<8x1024xf32>
    %c0_8 = arith.constant 0 : index
    %c0_9 = arith.constant 0 : index
    %9 = vector.load %arg5[%c0_8, %c0_9] : memref<1x1024xf32, #tpu.memory_space<vmem>>, vector<1x1024xf32>
    %10 = vector.broadcast %9 : vector<1x1024xf32> to vector<8x1024xf32>
    %11 = arith.addf %8, %10 : vector<8x1024xf32>
    %cst_10 = arith.constant 0.000000e+00 : f32
    %12 = vector.broadcast %cst_10 : f32 to vector<8x1024xf32>
    %13 = arith.maximumf %11, %12 : vector<8x1024xf32>
    %14 = vector.extract_strided_slice %13 {offsets = [0, 0], sizes = [8, 512], strides = [1, 1]} : vector<8x1024xf32> to vector<8x512xf32>
    %15 = arith.truncf %14 : vector<8x512xf32> to vector<8x512xbf16>
    %16 = vector.extract_strided_slice %13 {offsets = [0, 512], sizes = [8, 512], strides = [1, 1]} : vector<8x1024xf32> to vector<8x512xf32>
    %17 = arith.truncf %16 : vector<8x512xf32> to vector<8x512xbf16>
    %c0_11 = arith.constant 0 : index
    %c0_12 = arith.constant 0 : index
    %18 = vector.load %arg6[%c0_11, %c0_12] : memref<512x300xbf16, #tpu.memory_space<vmem>>, vector<512x300xbf16>
    %cst_13 = arith.constant dense<0.000000e+00> : vector<8x300xf32>
    %19 = tpu.matmul %15, %18, %cst_13 {dimension_numbers = #tpu.dot_dimension_numbers<[1], [0], [0], [1], [0, 0, 1, 1], [], []>} : vector<8x512xbf16>, vector<512x300xbf16>, vector<8x300xf32> -> vector<8x300xf32>
    %c0_14 = arith.constant 0 : index
    %c0_15 = arith.constant 0 : index
    %20 = vector.load %arg7[%c0_14, %c0_15] : memref<1x300xf32, #tpu.memory_space<vmem>>, vector<1x300xf32>
    %21 = vector.broadcast %20 : vector<1x300xf32> to vector<8x300xf32>
    %22 = arith.addf %19, %21 : vector<8x300xf32>
    %cst_16 = arith.constant 0.000000e+00 : f32
    %23 = vector.broadcast %cst_16 : f32 to vector<8x300xf32>
    %24 = arith.maximumf %22, %23 : vector<8x300xf32>
    %c0_17 = arith.constant 0 : index
    %c0_18 = arith.constant 0 : index
    %25 = vector.load %arg8[%c0_17, %c0_18] : memref<512x300xbf16, #tpu.memory_space<vmem>>, vector<512x300xbf16>
    %cst_19 = arith.constant dense<0.000000e+00> : vector<8x300xf32>
    %26 = tpu.matmul %17, %25, %cst_19 {dimension_numbers = #tpu.dot_dimension_numbers<[1], [0], [0], [1], [0, 0, 1, 1], [], []>} : vector<8x512xbf16>, vector<512x300xbf16>, vector<8x300xf32> -> vector<8x300xf32>
    %c0_20 = arith.constant 0 : index
    %c0_21 = arith.constant 0 : index
    %27 = vector.load %arg9[%c0_20, %c0_21] : memref<1x300xf32, #tpu.memory_space<vmem>>, vector<1x300xf32>
    %28 = vector.broadcast %27 : vector<1x300xf32> to vector<8x300xf32>
    %29 = arith.addf %26, %28 : vector<8x300xf32>
    %cst_22 = arith.constant 0.000000e+00 : f32
    %30 = vector.broadcast %cst_22 : f32 to vector<8x300xf32>
    %31 = arith.maximumf %29, %30 : vector<8x300xf32>
    %c0_23 = arith.constant 0 : index
    %c0_24 = arith.constant 0 : index
    %32 = vector.load %arg10[%c0_23, %c0_24] : memref<2x300xf32, #tpu.memory_space<vmem>>, vector<2x300xf32>
    %c0_25 = arith.constant 0 : index
    %c0_26 = arith.constant 0 : index
    %33 = vector.load %arg11[%c0_25, %c0_26] : memref<1x2xf32, #tpu.memory_space<vmem>>, vector<1x2xf32>
    %34 = vector.extract_strided_slice %32 {offsets = [0, 0], sizes = [1, 300], strides = [1, 1]} : vector<2x300xf32> to vector<1x300xf32>
    %35 = vector.broadcast %34 : vector<1x300xf32> to vector<8x300xf32>
    %36 = arith.mulf %24, %35 : vector<8x300xf32>
    %cst_27 = arith.constant dense<0.000000e+00> : vector<8xf32>
    %37 = vector.multi_reduction <add>, %36, %cst_27 [1] : vector<8x300xf32> to vector<8xf32>
    %38 = vector.shape_cast %37 : vector<8xf32> to vector<8x1xf32>
    %39 = vector.extract_strided_slice %33 {offsets = [0, 0], sizes = [1, 1], strides = [1, 1]} : vector<1x2xf32> to vector<1x1xf32>
    %40 = vector.broadcast %39 : vector<1x1xf32> to vector<8x1xf32>
    %41 = arith.addf %38, %40 : vector<8x1xf32>
    %42 = vector.extract_strided_slice %32 {offsets = [1, 0], sizes = [1, 300], strides = [1, 1]} : vector<2x300xf32> to vector<1x300xf32>
    %43 = vector.broadcast %42 : vector<1x300xf32> to vector<8x300xf32>
    %44 = arith.mulf %31, %43 : vector<8x300xf32>
    %cst_28 = arith.constant dense<0.000000e+00> : vector<8xf32>
    %45 = vector.multi_reduction <add>, %44, %cst_28 [1] : vector<8x300xf32> to vector<8xf32>
    %46 = vector.shape_cast %45 : vector<8xf32> to vector<8x1xf32>
    %47 = vector.extract_strided_slice %33 {offsets = [0, 1], sizes = [1, 1], strides = [1, 1]} : vector<1x2xf32> to vector<1x1xf32>
    %48 = vector.broadcast %47 : vector<1x1xf32> to vector<8x1xf32>
    %49 = arith.addf %46, %48 : vector<8x1xf32>
    %50 = arith.subf %41, %49 : vector<8x1xf32>
    %51 = math.absf %50 : vector<8x1xf32>
    %cst_29 = arith.constant 5.000000e-01 : f32
    %52 = vector.broadcast %cst_29 : f32 to vector<8x1xf32>
    %53 = arith.mulf %51, %52 : vector<8x1xf32>
    %54 = tpu.iota {dimensions = array<i32: 1>} : vector<8x128xi32>
    %c0_i32 = arith.constant 0 : i32
    %55 = vector.broadcast %c0_i32 : i32 to vector<8x128xi32>
    %56 = arith.cmpi eq, %54, %55 : vector<8x128xi32>
    %c1_i32 = arith.constant 1 : i32
    %57 = vector.broadcast %c1_i32 : i32 to vector<8x128xi32>
    %58 = arith.cmpi eq, %54, %57 : vector<8x128xi32>
    %c2_i32 = arith.constant 2 : i32
    %59 = vector.broadcast %c2_i32 : i32 to vector<8x128xi32>
    %60 = arith.cmpi eq, %54, %59 : vector<8x128xi32>
    %cst_30 = arith.constant 0.000000e+00 : f32
    %61 = vector.shape_cast %53 : vector<8x1xf32> to vector<8x1xf32>
    %62 = vector.broadcast %61 : vector<8x1xf32> to vector<8x128xf32>
    %63 = vector.broadcast %cst_30 : f32 to vector<8x128xf32>
    %64 = arith.select %60, %62, %63 : vector<8x128xi1>, vector<8x128xf32>
    %65 = vector.shape_cast %49 : vector<8x1xf32> to vector<8x1xf32>
    %66 = vector.broadcast %65 : vector<8x1xf32> to vector<8x128xf32>
    %67 = arith.select %58, %66, %64 : vector<8x128xi1>, vector<8x128xf32>
    %68 = vector.shape_cast %41 : vector<8x1xf32> to vector<8x1xf32>
    %69 = vector.broadcast %68 : vector<8x1xf32> to vector<8x128xf32>
    %70 = arith.select %56, %69, %67 : vector<8x128xi1>, vector<8x128xf32>
    %c0_31 = arith.constant 0 : index
    %c0_32 = arith.constant 0 : index
    %71 = vector.load %arg12[%c0_31, %c0_32] : memref<8x128xf32, #tpu.memory_space<vmem>>, vector<8x128xf32>
    tpu.vector_store %arg12[%c0_31, %c0_32], %70 {strides = array<i32>} : memref<8x128xf32, #tpu.memory_space<vmem>>, vector<8x128xf32>,
    return
  }
  func.func @transform_0(%arg0: i32) -> (i32, i32) {
    %c0_i32 = arith.constant 0 : i32
    %c0_i32_0 = arith.constant 0 : i32
    return %arg0, %c0_i32 : i32, i32
  }
  func.func @transform_1(%arg0: i32) -> (i32, i32) {
    %c0_i32 = arith.constant 0 : i32
    %c0_i32_0 = arith.constant 0 : i32
    return %arg0, %c0_i32 : i32, i32
  }
  func.func @transform_2(%arg0: i32) -> (i32, i32) {
    %c0_i32 = arith.constant 0 : i32
    %c0_i32_0 = arith.constant 0 : i32
    %c0_i32_1 = arith.constant 0 : i32
    return %c0_i32, %c0_i32_0 : i32, i32
  }
  func.func @transform_3(%arg0: i32) -> (i32, i32) {
    %c0_i32 = arith.constant 0 : i32
    %c0_i32_0 = arith.constant 0 : i32
    %c0_i32_1 = arith.constant 0 : i32
    return %c0_i32, %c0_i32_0 : i32, i32
  }
  func.func @transform_4(%arg0: i32) -> (i32, i32) {
    %c0_i32 = arith.constant 0 : i32
    %c0_i32_0 = arith.constant 0 : i32
    %c0_i32_1 = arith.constant 0 : i32
    return %c0_i32, %c0_i32_0 : i32, i32
  }
  func.func @transform_5(%arg0: i32) -> (i32, i32) {
    %c0_i32 = arith.constant 0 : i32
    %c0_i32_0 = arith.constant 0 : i32
    %c0_i32_1 = arith.constant 0 : i32
    return %c0_i32, %c0_i32_0 : i32, i32
  }
  func.func @transform_6(%arg0: i32) -> (i32, i32) {
    %c0_i32 = arith.constant 0 : i32
    %c0_i32_0 = arith.constant 0 : i32
    %c0_i32_1 = arith.constant 0 : i32
    return %c0_i32, %c0_i32_0 : i32, i32
  }
  func.func @transform_7(%arg0: i32) -> (i32, i32) {
    %c0_i32 = arith.constant 0 : i32
    %c0_i32_0 = arith.constant 0 : i32
    %c0_i32_1 = arith.constant 0 : i32
    return %c0_i32, %c0_i32_0 : i32, i32
  }
  func.func @transform_8(%arg0: i32) -> (i32, i32) {
    %c0_i32 = arith.constant 0 : i32
    %c0_i32_0 = arith.constant 0 : i32
    %c0_i32_1 = arith.constant 0 : i32
    return %c0_i32, %c0_i32_0 : i32, i32
  }
  func.func @transform_9(%arg0: i32) -> (i32, i32) {
    %c0_i32 = arith.constant 0 : i32
    %c0_i32_0 = arith.constant 0 : i32
    %c0_i32_1 = arith.constant 0 : i32
    return %c0_i32, %c0_i32_0 : i32, i32
  }
  func.func @transform_10(%arg0: i32) -> (i32, i32) {
    %c0_i32 = arith.constant 0 : i32
    %c0_i32_0 = arith.constant 0 : i32
    %c0_i32_1 = arith.constant 0 : i32
    return %c0_i32, %c0_i32_0 : i32, i32
  }
  func.func @transform_11(%arg0: i32) -> (i32, i32) {
    %c0_i32 = arith.constant 0 : i32
    %c0_i32_0 = arith.constant 0 : i32
    return %arg0, %c0_i32 : i32, i32
  }
}

</mosaic_0001>

<llo_original>
// kernel: ensemble_critic_forward.1
$region0: #{ensemble_critic_forward.1}
  #allocation0 [shape = 'u32[]', space=smem, size = 0x4, offset = 0x4, fixed_abs, tag = 'smem constant byte address 0x4 - core index']
  #allocation1 [shape = 'u32[72,128]{1,0:T(1,128)}', space=vmem, size = 0x9000, scoped, tag = 'internal scratch']
  %s0 = inlined_call_operand.vmem [shape: f32[8,12], index: 0, kind: input, shape index: {}]
  %s1 = inlined_call_operand.vmem [shape: f32[8,4], index: 1, kind: input, shape index: {}]
  %s2 = inlined_call_operand.vmem [shape: bf16[12,1024], index: 2, kind: input, shape index: {}]
  %s3 = inlined_call_operand.vmem [shape: bf16[4,1024], index: 3, kind: input, shape index: {}]
  %s4 = inlined_call_operand.vmem [shape: f32[1,1024], index: 4, kind: input, shape index: {}]
  %s5 = inlined_call_operand.vmem [shape: bf16[512,300], index: 5, kind: input, shape index: {}]
  %s6 = inlined_call_operand.vmem [shape: f32[1,300], index: 6, kind: input, shape index: {}]
  %s7 = inlined_call_operand.vmem [shape: bf16[512,300], index: 7, kind: input, shape index: {}]
  %s8 = inlined_call_operand.vmem [shape: f32[1,300], index: 8, kind: input, shape index: {}]
  %s9 = inlined_call_operand.vmem [shape: f32[2,300], index: 9, kind: input, shape index: {}]
  %s10 = inlined_call_operand.vmem [shape: f32[1,2], index: 10, kind: input, shape index: {}]
  %s11 = inlined_call_operand.vmem [shape: f32[8,128], index: 11, kind: output, shape index: {}]
  %s12 = sld [smem:[#allocation0]]
  $region54: #{ensemble_critic_forward.1} parent=0
    _
  %s14 = ssub.s32 1, %s12
  %s15 = scalar_select 0, %s14, %s12
  // Predicated region
  $region2: #{ensemble_critic_forward.1} parent=0 // pred_check
    _
  $region3: #{ensemble_critic_forward.1} parent=0 // pred_check_branch
    %17 = sbr.rel (0) target = $region5
  $region4: #{ensemble_critic_forward.1} parent=0 // pred_region
    _
  $region5: #{ensemble_critic_forward.1} parent=0 // pred_fallthru
    _
  // Predicated region
  $region6: #{ensemble_critic_forward.1} parent=0 // pred_check
    _
  $region7: #{ensemble_critic_forward.1} parent=0 // pred_check_branch
    %19 = sbr.rel (0) target = $region9
  $region8: #{ensemble_critic_forward.1} parent=0 // pred_region
    _
  $region9: #{ensemble_critic_forward.1} parent=0 // pred_fallthru
    _
  // Predicated region
  $region10: #{ensemble_critic_forward.1} parent=0 // pred_check
    _
  $region11: #{ensemble_critic_forward.1} parent=0 // pred_check_branch
    %21 = sbr.rel (0) target = $region13
  $region12: #{ensemble_critic_forward.1} parent=0 // pred_region
    _
  $region13: #{ensemble_critic_forward.1} parent=0 // pred_fallthru
    _
  // Predicated region
  $region14: #{ensemble_critic_forward.1} parent=0 // pred_check
    _
  $region15: #{ensemble_critic_forward.1} parent=0 // pred_check_branch
    %23 = sbr.rel (0) target = $region17
  $region16: #{ensemble_critic_forward.1} parent=0 // pred_region
    _
  $region17: #{ensemble_critic_forward.1} parent=0 // pred_fallthru
    _
  // Predicated region
  $region18: #{ensemble_critic_forward.1} parent=0 // pred_check
    _
  $region19: #{ensemble_critic_forward.1} parent=0 // pred_check_branch
    %25 = sbr.rel (0) target = $region21
  $region20: #{ensemble_critic_forward.1} parent=0 // pred_region
    _
  $region21: #{ensemble_critic_forward.1} parent=0 // pred_fallthru
    _
  // Predicated region
  $region22: #{ensemble_critic_forward.1} parent=0 // pred_check
    _
  $region23: #{ensemble_critic_forward.1} parent=0 // pred_check_branch
    %27 = sbr.rel (0) target = $region25
  $region24: #{ensemble_critic_forward.1} parent=0 // pred_region
    _
  $region25: #{ensemble_critic_forward.1} parent=0 // pred_fallthru
    _
  // Predicated region
  $region26: #{ensemble_critic_forward.1} parent=0 // pred_check
    _
  $region27: #{ensemble_critic_forward.1} parent=0 // pred_check_branch
    %29 = sbr.rel (0) target = $region29
  $region28: #{ensemble_critic_forward.1} parent=0 // pred_region
    _
  $region29: #{ensemble_critic_forward.1} parent=0 // pred_fallthru
    _
  // Predicated region
  $region30: #{ensemble_critic_forward.1} parent=0 // pred_check
    _
  $region31: #{ensemble_critic_forward.1} parent=0 // pred_check_branch
    %31 = sbr.rel (0) target = $region33
  $region32: #{ensemble_critic_forward.1} parent=0 // pred_region
    _
  $region33: #{ensemble_critic_forward.1} parent=0 // pred_fallthru
    _
  // Predicated region
  $region34: #{ensemble_critic_forward.1} parent=0 // pred_check
    _
  $region35: #{ensemble_critic_forward.1} parent=0 // pred_check_branch
    %33 = sbr.rel (0) target = $region37
  $region36: #{ensemble_critic_forward.1} parent=0 // pred_region
    _
  $region37: #{ensemble_critic_forward.1} parent=0 // pred_fallthru
    _
  // Predicated region
  $region38: #{ensemble_critic_forward.1} parent=0 // pred_check
    _
  $region39: #{ensemble_critic_forward.1} parent=0 // pred_check_branch
    %35 = sbr.rel (0) target = $region41
  $region40: #{ensemble_critic_forward.1} parent=0 // pred_region
    _
  $region41: #{ensemble_critic_forward.1} parent=0 // pred_fallthru
    _
  // Predicated region
  $region42: #{ensemble_critic_forward.1} parent=0 // pred_check
    _
  $region43: #{ensemble_critic_forward.1} parent=0 // pred_check_branch
    %37 = sbr.rel (0) target = $region45
  $region44: #{ensemble_critic_forward.1} parent=0 // pred_region
    _
  $region45: #{ensemble_critic_forward.1} parent=0 // pred_fallthru
    _
  %v39 = vld [vmem:[%s0] sm:$0xff]
  %v40 = vpack.c.bf16 %v39, %v39
  %v41 = vld [vmem:[%s1] sm:$0xff]
  %v42 = vpack.c.bf16 %v41, %v41
  %v43 = vld [vmem:[%s2] sm:$0xff]
  %v44 = vld [vmem:[%s2 + $0x8] sm:$0xff]
  %v45 = vld [vmem:[%s2 + $0x10] sm:$0xff]
  %v46 = vld [vmem:[%s2 + $0x18] sm:$0xff]
  %v47 = vld [vmem:[%s2 + $0x20] sm:$0x33]
  %v48 = vld [vmem:[%s2 + $0x28] sm:$0x33]
  %v49 = vld [vmem:[%s2 + $0x30] sm:$0x33]
  %v50 = vld [vmem:[%s2 + $0x38] sm:$0x33]
  %v51 = vld [vmem:[%s3] sm:$0xff]
  %v52 = vld [vmem:[%s3 + $0x8] sm:$0xff]
  %54 = vst [vmem:[#allocation1] ss:$4 sm:$0xff] %v51
  %s56 = scalar_lea.vmem [#allocation1], 32
  %57 = vst [vmem:[%s56] ss:$4 sm:$0xff] %v52
  %v58 = vld.sshfl [vmem:[#allocation1] sm:$0xff pattern:$0x73625140]
  %v59 = vld.sshfl [vmem:[#allocation1 + $0x8] sm:$0xff pattern:$0x73625140]
  %v60 = vld.sshfl [vmem:[#allocation1 + $0x10] sm:$0xff pattern:$0x73625140]
  %v61 = vld.sshfl [vmem:[#allocation1 + $0x18] sm:$0xff pattern:$0x73625140]
  %v62 = vld.sshfl [vmem:[#allocation1 + $0x20] sm:$0xff pattern:$0x73625140]
  %v63 = vld.sshfl [vmem:[#allocation1 + $0x28] sm:$0xff pattern:$0x73625140]
  %v64 = vld.sshfl [vmem:[#allocation1 + $0x30] sm:$0xff pattern:$0x73625140]
  %v65 = vld.sshfl [vmem:[#allocation1 + $0x38] sm:$0xff pattern:$0x73625140]
  %vm66 = vcmask 31744
  %v68 = vsel %vm66, %v42, 0
  %vm70 = vcmask 1041408
  %v71 = vsel %vm70, %v58, 0
  %v73 = vsel %vm70, %v59, 0
  %v75 = vsel %vm70, %v60, 0
  %v77 = vsel %vm70, %v61, 0
  %v79 = vsel %vm70, %v62, 0
  %v81 = vsel %vm70, %v63, 0
  %v83 = vsel %vm70, %v64, 0
  %v85 = vsel %vm70, %v65, 0
  %87 = vmatpush.bf16.msra.mxu0 0
  %88 = vmatpush.bf16.msra.mxu0 0
  %89 = vmatpush.bf16.msra.mxu0 0
  %90 = vmatpush.bf16.msra.mxu0 0
  %91 = vmatpush.bf16.msra.mxu0 0
  %92 = vmatpush.bf16.msra.mxu0 0
  %93 = vmatpush.bf16.msra.mxu0 0
  %94 = vmatpush.bf16.msra.mxu0 %v71
  %95 = vmatmul.bf16.gmra.mxu0 %v68
  %v96 = vpop.f32.mrf.mxu0
  %v97 = vadd.f32 0.0, %v96
  %v98 = vpop.f32.mrf.mxu0
  %99 = vdwg.mxu0
  %100 = vmatpush.bf16.msra.mxu0 0
  %101 = vmatpush.bf16.msra.mxu0 0
  %102 = vmatpush.bf16.msra.mxu0 0
  %103 = vmatpush.bf16.msra.mxu0 0
  %104 = vmatpush.bf16.msra.mxu0 0
  %105 = vmatpush.bf16.msra.mxu0 0
  %106 = vmatpush.bf16.msra.mxu0 0
  %107 = vmatpush.bf16.msra.mxu0 %v73
  %108 = vmatmul.bf16.gmra.mxu0 %v68
  %v109 = vpop.f32.mrf.mxu0
  %v110 = vadd.f32 0.0, %v109
  %v111 = vpop.f32.mrf.mxu0
  %112 = vdwg.mxu0
  %113 = vmatpush.bf16.msra.mxu0 0
  %114 = vmatpush.bf16.msra.mxu0 0
  %115 = vmatpush.bf16.msra.mxu0 0
  %116 = vmatpush.bf16.msra.mxu0 0
  %117 = vmatpush.bf16.msra.mxu0 0
  %118 = vmatpush.bf16.msra.mxu0 0
  %119 = vmatpush.bf16.msra.mxu0 0
  %120 = vmatpush.bf16.msra.mxu0 %v75
  %121 = vmatmul.bf16.gmra.mxu0 %v68
  %v122 = vpop.f32.mrf.mxu0
  %v123 = vadd.f32 0.0, %v122
  %v124 = vpop.f32.mrf.mxu0
  %125 = vdwg.mxu0
  %126 = vmatpush.bf16.msra.mxu0 0
  %127 = vmatpush.bf16.msra.mxu0 0
  %128 = vmatpush.bf16.msra.mxu0 0
  %129 = vmatpush.bf16.msra.mxu0 0
  %130 = vmatpush.bf16.msra.mxu0 0
  %131 = vmatpush.bf16.msra.mxu0 0
  %132 = vmatpush.bf16.msra.mxu0 0
  %133 = vmatpush.bf16.msra.mxu0 %v77
  %134 = vmatmul.bf16.gmra.mxu0 %v68
  %v135 = vpop.f32.mrf.mxu0
  %v136 = vadd.f32 0.0, %v135
  %v137 = vpop.f32.mrf.mxu0
  %138 = vdwg.mxu0
  %139 = vmatpush.bf16.msra.mxu0 0
  %140 = vmatpush.bf16.msra.mxu0 0
  %141 = vmatpush.bf16.msra.mxu0 0
  %142 = vmatpush.bf16.msra.mxu0 0
  %143 = vmatpush.bf16.msra.mxu0 0
  %144 = vmatpush.bf16.msra.mxu0 0
  %145 = vmatpush.bf16.msra.mxu0 0
  %146 = vmatpush.bf16.msra.mxu0 %v79
  %147 = vmatmul.bf16.gmra.mxu0 %v68
  %v148 = vpop.f32.mrf.mxu0
  %v149 = vadd.f32 0.0, %v148
  %v150 = vpop.f32.mrf.mxu0
  %151 = vdwg.mxu0
  %152 = vmatpush.bf16.msra.mxu0 0
  %153 = vmatpush.bf16.msra.mxu0 0
  %154 = vmatpush.bf16.msra.mxu0 0
  %155 = vmatpush.bf16.msra.mxu0 0
  %156 = vmatpush.bf16.msra.mxu0 0
  %157 = vmatpush.bf16.msra.mxu0 0
  %158 = vmatpush.bf16.msra.mxu0 0
  %159 = vmatpush.bf16.msra.mxu0 %v81
  %160 = vmatmul.bf16.gmra.mxu0 %v68
  %v161 = vpop.f32.mrf.mxu0
  %v162 = vadd.f32 0.0, %v161
  %v163 = vpop.f32.mrf.mxu0
  %164 = vdwg.mxu0
  %165 = vmatpush.bf16.msra.mxu0 0
  %166 = vmatpush.bf16.msra.mxu0 0
  %167 = vmatpush.bf16.msra.mxu0 0
  %168 = vmatpush.bf16.msra.mxu0 0
  %169 = vmatpush.bf16.msra.mxu0 0
  %170 = vmatpush.bf16.msra.mxu0 0
  %171 = vmatpush.bf16.msra.mxu0 0
  %172 = vmatpush.bf16.msra.mxu0 %v83
  %173 = vmatmul.bf16.gmra.mxu0 %v68
  %v174 = vpop.f32.mrf.mxu0
  %v175 = vadd.f32 0.0, %v174
  %v176 = vpop.f32.mrf.mxu0
  %177 = vdwg.mxu0
  %178 = vmatpush.bf16.msra.mxu0 0
  %179 = vmatpush.bf16.msra.mxu0 0
  %180 = vmatpush.bf16.msra.mxu0 0
  %181 = vmatpush.bf16.msra.mxu0 0
  %182 = vmatpush.bf16.msra.mxu0 0
  %183 = vmatpush.bf16.msra.mxu0 0
  %184 = vmatpush.bf16.msra.mxu0 0
  %185 = vmatpush.bf16.msra.mxu0 %v85
  %186 = vmatmul.bf16.gmra.mxu0 %v68
  %v187 = vpop.f32.mrf.mxu0
  %v188 = vadd.f32 0.0, %v187
  %v189 = vpop.f32.mrf.mxu0
  %190 = vdwg.mxu0
  %v199 = vunpack.c.l.b16 %v43
  %v200 = vunpack.c.h.b16 %v43
  %v201 = vunpack.c.l.b16 %v44
  %v202 = vunpack.c.h.b16 %v44
  %v203 = vunpack.c.l.b16 %v45
  %v204 = vunpack.c.h.b16 %v45
  %v205 = vunpack.c.l.b16 %v46
  %v206 = vunpack.c.h.b16 %v46
  %v207 = vunpack.c.l.b16 %v47
  %v208 = vunpack.c.h.b16 %v47
  %v209 = vunpack.c.l.b16 %v48
  %v210 = vunpack.c.h.b16 %v48
  %v211 = vunpack.c.l.b16 %v49
  %v212 = vunpack.c.h.b16 %v49
  %v213 = vunpack.c.l.b16 %v50
  %v214 = vunpack.c.h.b16 %v50
  %v215 = vpack.c.b16 %v207, %v199
  %v216 = vpack.c.b16 %v208, %v200
  %v217 = vpack.c.b16 %v209, %v201
  %v218 = vpack.c.b16 %v210, %v202
  %v219 = vpack.c.b16 %v211, %v203
  %v220 = vpack.c.b16 %v212, %v204
  %v221 = vpack.c.b16 %v213, %v205
  %v222 = vpack.c.b16 %v214, %v206
  %vm223 = vcmask 97280
  %v225 = vsel %vm223, %v40, 0
  %vm227 = vcmask 1045504
  %v229 = vsel %vm227, %v215, 0
  %v232 = vsel %vm227, %v216, 0
  %v235 = vsel %vm227, %v217, 0
  %v238 = vsel %vm227, %v218, 0
  %v241 = vsel %vm227, %v219, 0
  %v244 = vsel %vm227, %v220, 0
  %v247 = vsel %vm227, %v221, 0
  %v250 = vsel %vm227, %v222, 0
  %252 = vmatpush.bf16.msra.mxu0 0
  %253 = vmatpush.bf16.msra.mxu0 0
  %254 = vmatpush.bf16.msra.mxu0 0
  %255 = vmatpush.bf16.msra.mxu0 0
  %256 = vmatpush.bf16.msra.mxu0 0
  %257 = vmatpush.bf16.msra.mxu0 0
  %258 = vmatpush.bf16.msra.mxu0 0
  %259 = vmatpush.bf16.msra.mxu0 %v229
  %260 = vmatmul.bf16.gmra.mxu0 %v225
  %v261 = vpop.f32.mrf.mxu0
  %v262 = vadd.f32 %v97, %v261
  %v263 = vpop.f32.mrf.mxu0
  %264 = vdwg.mxu0
  %265 = vmatpush.bf16.msra.mxu0 0
  %266 = vmatpush.bf16.msra.mxu0 0
  %267 = vmatpush.bf16.msra.mxu0 0
  %268 = vmatpush.bf16.msra.mxu0 0
  %269 = vmatpush.bf16.msra.mxu0 0
  %270 = vmatpush.bf16.msra.mxu0 0
  %271 = vmatpush.bf16.msra.mxu0 0
  %272 = vmatpush.bf16.msra.mxu0 %v232
  %273 = vmatmul.bf16.gmra.mxu0 %v225
  %v274 = vpop.f32.mrf.mxu0
  %v275 = vadd.f32 %v110, %v274
  %v276 = vpop.f32.mrf.mxu0
  %277 = vdwg.mxu0
  %278 = vmatpush.bf16.msra.mxu0 0
  %279 = vmatpush.bf16.msra.mxu0 0
  %280 = vmatpush.bf16.msra.mxu0 0
  %281 = vmatpush.bf16.msra.mxu0 0
  %282 = vmatpush.bf16.msra.mxu0 0
  %283 = vmatpush.bf16.msra.mxu0 0
  %284 = vmatpush.bf16.msra.mxu0 0
  %285 = vmatpush.bf16.msra.mxu0 %v235
  %286 = vmatmul.bf16.gmra.mxu0 %v225
  %v287 = vpop.f32.mrf.mxu0
  %v288 = vadd.f32 %v123, %v287
  %v289 = vpop.f32.mrf.mxu0
  %290 = vdwg.mxu0
  %291 = vmatpush.bf16.msra.mxu0 0
  %292 = vmatpush.bf16.msra.mxu0 0
  %293 = vmatpush.bf16.msra.mxu0 0
  %294 = vmatpush.bf16.msra.mxu0 0
  %295 = vmatpush.bf16.msra.mxu0 0
  %296 = vmatpush.bf16.msra.mxu0 0
  %297 = vmatpush.bf16.msra.mxu0 0
  %298 = vmatpush.bf16.msra.mxu0 %v238
  %299 = vmatmul.bf16.gmra.mxu0 %v225
  %v300 = vpop.f32.mrf.mxu0
  %v301 = vadd.f32 %v136, %v300
  %v302 = vpop.f32.mrf.mxu0
  %303 = vdwg.mxu0
  %304 = vmatpush.bf16.msra.mxu0 0
  %305 = vmatpush.bf16.msra.mxu0 0
  %306 = vmatpush.bf16.msra.mxu0 0
  %307 = vmatpush.bf16.msra.mxu0 0
  %308 = vmatpush.bf16.msra.mxu0 0
  %309 = vmatpush.bf16.msra.mxu0 0
  %310 = vmatpush.bf16.msra.mxu0 0
  %311 = vmatpush.bf16.msra.mxu0 %v241
  %312 = vmatmul.bf16.gmra.mxu0 %v225
  %v313 = vpop.f32.mrf.mxu0
  %v314 = vadd.f32 %v149, %v313
  %v315 = vpop.f32.mrf.mxu0
  %316 = vdwg.mxu0
  %317 = vmatpush.bf16.msra.mxu0 0
  %318 = vmatpush.bf16.msra.mxu0 0
  %319 = vmatpush.bf16.msra.mxu0 0
  %320 = vmatpush.bf16.msra.mxu0 0
  %321 = vmatpush.bf16.msra.mxu0 0
  %322 = vmatpush.bf16.msra.mxu0 0
  %323 = vmatpush.bf16.msra.mxu0 0
  %324 = vmatpush.bf16.msra.mxu0 %v244
  %325 = vmatmul.bf16.gmra.mxu0 %v225
  %v326 = vpop.f32.mrf.mxu0
  %v327 = vadd.f32 %v162, %v326
  %v328 = vpop.f32.mrf.mxu0
  %329 = vdwg.mxu0
  %330 = vmatpush.bf16.msra.mxu0 0
  %331 = vmatpush.bf16.msra.mxu0 0
  %332 = vmatpush.bf16.msra.mxu0 0
  %333 = vmatpush.bf16.msra.mxu0 0
  %334 = vmatpush.bf16.msra.mxu0 0
  %335 = vmatpush.bf16.msra.mxu0 0
  %336 = vmatpush.bf16.msra.mxu0 0
  %337 = vmatpush.bf16.msra.mxu0 %v247
  %338 = vmatmul.bf16.gmra.mxu0 %v225
  %v339 = vpop.f32.mrf.mxu0
  %v340 = vadd.f32 %v175, %v339
  %v341 = vpop.f32.mrf.mxu0
  %342 = vdwg.mxu0
  %343 = vmatpush.bf16.msra.mxu0 0
  %344 = vmatpush.bf16.msra.mxu0 0
  %345 = vmatpush.bf16.msra.mxu0 0
  %346 = vmatpush.bf16.msra.mxu0 0
  %347 = vmatpush.bf16.msra.mxu0 0
  %348 = vmatpush.bf16.msra.mxu0 0
  %349 = vmatpush.bf16.msra.mxu0 0
  %350 = vmatpush.bf16.msra.mxu0 %v250
  %351 = vmatmul.bf16.gmra.mxu0 %v225
  %v352 = vpop.f32.mrf.mxu0
  %v353 = vadd.f32 %v188, %v352
  %v354 = vpop.f32.mrf.mxu0
  %355 = vdwg.mxu0
  %v356 = vld [vmem:[%s4] sm:$0xff]
  %v358 = vperm.slane %v356, 0
  %v359 = vperm.slane %v356, 1
  %v360 = vperm.slane %v356, 2
  %v361 = vperm.slane %v356, 3
  %v362 = vperm.slane %v356, 4
  %v363 = vperm.slane %v356, 5
  %v364 = vperm.slane %v356, 6
  %v365 = vperm.slane %v356, 7
  %v374 = vadd.f32 %v262, %v358
  %v375 = vadd.f32 %v275, %v359
  %v376 = vadd.f32 %v288, %v360
  %v377 = vadd.f32 %v301, %v361
  %v378 = vadd.f32 %v314, %v362
  %v379 = vadd.f32 %v327, %v363
  %v380 = vadd.f32 %v340, %v364
  %v381 = vadd.f32 %v353, %v365
  %v382 = vmax.f32 %v374, 0.0
  %v383 = vmax.f32 %v375, 0.0
  %v384 = vmax.f32 %v376, 0.0
  %v385 = vmax.f32 %v377, 0.0
  %v386 = vmax.f32 %v378, 0.0
  %v387 = vmax.f32 %v379, 0.0
  %v388 = vmax.f32 %v380, 0.0
  %v389 = vmax.f32 %v381, 0.0
  %v390 = vpack.c.bf16 %v382, %v382
  %v391 = vpack.c.bf16 %v383, %v383
  %v392 = vpack.c.bf16 %v384, %v384
  %v393 = vpack.c.bf16 %v385, %v385
  %v394 = vpack.c.bf16 %v386, %v386
  %v395 = vpack.c.bf16 %v387, %v387
  %v396 = vpack.c.bf16 %v388, %v388
  %v397 = vpack.c.bf16 %v389, %v389
  %v398 = vld [vmem:[%s5] sm:$0xff]
  %v399 = vld [vmem:[%s5 + $0x8] sm:$0xf]
  %v400 = vld [vmem:[%s5 + $0xc] sm:$0xff]
  %v401 = vld [vmem:[%s5 + $0x14] sm:$0xf]
  %v402 = vld [vmem:[%s5 + $0x18] sm:$0xff]
  %v403 = vld [vmem:[%s5 + $0x20] sm:$0xf]
  %v404 = vld [vmem:[%s5 + $0x24] sm:$0xff]
  %v405 = vld [vmem:[%s5 + $0x2c] sm:$0xf]
  %v406 = vld [vmem:[%s5 + $0x30] sm:$0xff]
  %v407 = vld [vmem:[%s5 + $0x38] sm:$0xf]
  %v408 = vld [vmem:[%s5 + $0x3c] sm:$0xff]
  %v409 = vld [vmem:[%s5 + $0x44] sm:$0xf]
  %v410 = vld [vmem:[%s5 + $0x48] sm:$0xff]
  %v411 = vld [vmem:[%s5 + $0x50] sm:$0xf]
  %v412 = vld [vmem:[%s5 + $0x54] sm:$0xff]
  %v413 = vld [vmem:[%s5 + $0x5c] sm:$0xf]
  %v414 = vld [vmem:[%s5 + $0x60] sm:$0xff]
  %v415 = vld [vmem:[%s5 + $0x68] sm:$0xf]
  %v416 = vld [vmem:[%s5 + $0x6c] sm:$0xff]
  %v417 = vld [vmem:[%s5 + $0x74] sm:$0xf]
  %v418 = vld [vmem:[%s5 + $0x78] sm:$0xff]
  %v419 = vld [vmem:[%s5 + $0x80] sm:$0xf]
  %v420 = vld [vmem:[%s5 + $0x84] sm:$0xff]
  %v421 = vld [vmem:[%s5 + $0x8c] sm:$0xf]
  %v422 = vld [vmem:[%s5 + $0x90] sm:$0xff]
  %v423 = vld [vmem:[%s5 + $0x98] sm:$0xf]
  %v424 = vld [vmem:[%s5 + $0x9c] sm:$0xff]
  %v425 = vld [vmem:[%s5 + $0xa4] sm:$0xf]
  %v426 = vld [vmem:[%s5 + $0xa8] sm:$0xff]
  %v427 = vld [vmem:[%s5 + $0xb0] sm:$0xf]
  %v428 = vld [vmem:[%s5 + $0xb4] sm:$0xff]
  %v429 = vld [vmem:[%s5 + $0xbc] sm:$0xf]
  %v430 = vld [vmem:[%s5 + $0xc0] sm:$0xff]
  %v431 = vld [vmem:[%s5 + $0xc8] sm:$0xf]
  %v432 = vld [vmem:[%s5 + $0xcc] sm:$0xff]
  %v433 = vld [vmem:[%s5 + $0xd4] sm:$0xf]
  %v434 = vld [vmem:[%s5 + $0xd8] sm:$0xff]
  %v435 = vld [vmem:[%s5 + $0xe0] sm:$0xf]
  %v436 = vld [vmem:[%s5 + $0xe4] sm:$0xff]
  %v437 = vld [vmem:[%s5 + $0xec] sm:$0xf]
  %v438 = vld [vmem:[%s5 + $0xf0] sm:$0xff]
  %v439 = vld [vmem:[%s5 + $0xf8] sm:$0xf]
  %v440 = vld [vmem:[%s5 + $0xfc] sm:$0xff]
  %v441 = vld [vmem:[%s5 + $0x104] sm:$0xf]
  %v442 = vld [vmem:[%s5 + $0x108] sm:$0xff]
  %v443 = vld [vmem:[%s5 + $0x110] sm:$0xf]
  %v444 = vld [vmem:[%s5 + $0x114] sm:$0xff]
  %v445 = vld [vmem:[%s5 + $0x11c] sm:$0xf]
  %v446 = vld [vmem:[%s5 + $0x120] sm:$0xff]
  %v447 = vld [vmem:[%s5 + $0x128] sm:$0xf]
  %v448 = vld [vmem:[%s5 + $0x12c] sm:$0xff]
  %v449 = vld [vmem:[%s5 + $0x134] sm:$0xf]
  %v450 = vld [vmem:[%s5 + $0x138] sm:$0xff]
  %v451 = vld [vmem:[%s5 + $0x140] sm:$0xf]
  %v452 = vld [vmem:[%s5 + $0x144] sm:$0xff]
  %v453 = vld [vmem:[%s5 + $0x14c] sm:$0xf]
  %v454 = vld [vmem:[%s5 + $0x150] sm:$0xff]
  %v455 = vld [vmem:[%s5 + $0x158] sm:$0xf]
  %v456 = vld [vmem:[%s5 + $0x15c] sm:$0xff]
  %v457 = vld [vmem:[%s5 + $0x164] sm:$0xf]
  %v458 = vld [vmem:[%s5 + $0x168] sm:$0xff]
  %v459 = vld [vmem:[%s5 + $0x170] sm:$0xf]
  %v460 = vld [vmem:[%s5 + $0x174] sm:$0xff]
  %v461 = vld [vmem:[%s5 + $0x17c] sm:$0xf]
  %v462 = vld [vmem:[%s5 + $0x180] sm:$0xff]
  %v463 = vld [vmem:[%s5 + $0x188] sm:$0xf]
  %v464 = vld [vmem:[%s5 + $0x18c] sm:$0xff]
  %v465 = vld [vmem:[%s5 + $0x194] sm:$0xf]
  %v466 = vld [vmem:[%s5 + $0x198] sm:$0xff]
  %v467 = vld [vmem:[%s5 + $0x1a0] sm:$0xf]
  %v468 = vld [vmem:[%s5 + $0x1a4] sm:$0xff]
  %v469 = vld [vmem:[%s5 + $0x1ac] sm:$0xf]
  %v470 = vld [vmem:[%s5 + $0x1b0] sm:$0xff]
  %v471 = vld [vmem:[%s5 + $0x1b8] sm:$0xf]
  %v472 = vld [vmem:[%s5 + $0x1bc] sm:$0xff]
  %v473 = vld [vmem:[%s5 + $0x1c4] sm:$0xf]
  %v474 = vld [vmem:[%s5 + $0x1c8] sm:$0xff]
  %v475 = vld [vmem:[%s5 + $0x1d0] sm:$0xf]
  %v476 = vld [vmem:[%s5 + $0x1d4] sm:$0xff]
  %v477 = vld [vmem:[%s5 + $0x1dc] sm:$0xf]
  %v478 = vld [vmem:[%s5 + $0x1e0] sm:$0xff]
  %v479 = vld [vmem:[%s5 + $0x1e8] sm:$0xf]
  %v480 = vld [vmem:[%s5 + $0x1ec] sm:$0xff]
  %v481 = vld [vmem:[%s5 + $0x1f4] sm:$0xf]
  %v482 = vld [vmem:[%s5 + $0x1f8] sm:$0xff]
  %v483 = vld [vmem:[%s5 + $0x200] sm:$0xf]
  %v484 = vld [vmem:[%s5 + $0x204] sm:$0xff]
  %v485 = vld [vmem:[%s5 + $0x20c] sm:$0xf]
  %v486 = vld [vmem:[%s5 + $0x210] sm:$0xff]
  %v487 = vld [vmem:[%s5 + $0x218] sm:$0xf]
  %v488 = vld [vmem:[%s5 + $0x21c] sm:$0xff]
  %v489 = vld [vmem:[%s5 + $0x224] sm:$0xf]
  %v490 = vld [vmem:[%s5 + $0x228] sm:$0xff]
  %v491 = vld [vmem:[%s5 + $0x230] sm:$0xf]
  %v492 = vld [vmem:[%s5 + $0x234] sm:$0xff]
  %v493 = vld [vmem:[%s5 + $0x23c] sm:$0xf]
  %v494 = vld [vmem:[%s5 + $0x240] sm:$0xff]
  %v495 = vld [vmem:[%s5 + $0x248] sm:$0xf]
  %v496 = vld [vmem:[%s5 + $0x24c] sm:$0xff]
  %v497 = vld [vmem:[%s5 + $0x254] sm:$0xf]
  %v498 = vld [vmem:[%s5 + $0x258] sm:$0xff]
  %v499 = vld [vmem:[%s5 + $0x260] sm:$0xf]
  %v500 = vld [vmem:[%s5 + $0x264] sm:$0xff]
  %v501 = vld [vmem:[%s5 + $0x26c] sm:$0xf]
  %v502 = vld [vmem:[%s5 + $0x270] sm:$0xff]
  %v503 = vld [vmem:[%s5 + $0x278] sm:$0xf]
  %v504 = vld [vmem:[%s5 + $0x27c] sm:$0xff]
  %v505 = vld [vmem:[%s5 + $0x284] sm:$0xf]
  %v506 = vld [vmem:[%s5 + $0x288] sm:$0xff]
  %v507 = vld [vmem:[%s5 + $0x290] sm:$0xf]
  %v508 = vld [vmem:[%s5 + $0x294] sm:$0xff]
  %v509 = vld [vmem:[%s5 + $0x29c] sm:$0xf]
  %v510 = vld [vmem:[%s5 + $0x2a0] sm:$0xff]
  %v511 = vld [vmem:[%s5 + $0x2a8] sm:$0xf]
  %v512 = vld [vmem:[%s5 + $0x2ac] sm:$0xff]
  %v513 = vld [vmem:[%s5 + $0x2b4] sm:$0xf]
  %v514 = vld [vmem:[%s5 + $0x2b8] sm:$0xff]
  %v515 = vld [vmem:[%s5 + $0x2c0] sm:$0xf]
  %v516 = vld [vmem:[%s5 + $0x2c4] sm:$0xff]
  %v517 = vld [vmem:[%s5 + $0x2cc] sm:$0xf]
  %v518 = vld [vmem:[%s5 + $0x2d0] sm:$0xff]
  %v519 = vld [vmem:[%s5 + $0x2d8] sm:$0xf]
  %v520 = vld [vmem:[%s5 + $0x2dc] sm:$0xff]
  %v521 = vld [vmem:[%s5 + $0x2e4] sm:$0xf]
  %v522 = vld [vmem:[%s5 + $0x2e8] sm:$0xff]
  %v523 = vld [vmem:[%s5 + $0x2f0] sm:$0xf]
  %v524 = vld [vmem:[%s5 + $0x2f4] sm:$0xff]
  %v525 = vld [vmem:[%s5 + $0x2fc] sm:$0xf]
  %v526 = vld [vmem:[%s6] sm:$0x7]
  %v528 = vperm.slane %v526, 0
  %v529 = vperm.slane %v526, 1
  %v530 = vperm.slane %v526, 2
  %v662 = vunpack.c.l.b16 %v398
  %v663 = vunpack.c.h.b16 %v398
  %v664 = vunpack.c.l.b16 %v399
  %v665 = vunpack.c.l.b16 %v400
  %v666 = vunpack.c.h.b16 %v400
  %v667 = vunpack.c.l.b16 %v401
  %v668 = vunpack.c.l.b16 %v402
  %v669 = vunpack.c.h.b16 %v402
  %v670 = vunpack.c.l.b16 %v403
  %v671 = vunpack.c.l.b16 %v404
  %v672 = vunpack.c.h.b16 %v404
  %v673 = vunpack.c.l.b16 %v405
  %v674 = vunpack.c.l.b16 %v406
  %v675 = vunpack.c.h.b16 %v406
  %v676 = vunpack.c.l.b16 %v407
  %v677 = vunpack.c.l.b16 %v408
  %v678 = vunpack.c.h.b16 %v408
  %v679 = vunpack.c.l.b16 %v409
  %v680 = vunpack.c.l.b16 %v410
  %v681 = vunpack.c.h.b16 %v410
  %v682 = vunpack.c.l.b16 %v411
  %v683 = vunpack.c.l.b16 %v412
  %v684 = vunpack.c.h.b16 %v412
  %v685 = vunpack.c.l.b16 %v413
  %v686 = vunpack.c.l.b16 %v414
  %v687 = vunpack.c.h.b16 %v414
  %v688 = vunpack.c.l.b16 %v415
  %v689 = vunpack.c.l.b16 %v416
  %v690 = vunpack.c.h.b16 %v416
  %v691 = vunpack.c.l.b16 %v417
  %v692 = vunpack.c.l.b16 %v418
  %v693 = vunpack.c.h.b16 %v418
  %v694 = vunpack.c.l.b16 %v419
  %v695 = vunpack.c.l.b16 %v420
  %v696 = vunpack.c.h.b16 %v420
  %v697 = vunpack.c.l.b16 %v421
  %v698 = vunpack.c.l.b16 %v422
  %v699 = vunpack.c.h.b16 %v422
  %v700 = vunpack.c.l.b16 %v423
  %v701 = vunpack.c.l.b16 %v424
  %v702 = vunpack.c.h.b16 %v424
  %v703 = vunpack.c.l.b16 %v425
  %v704 = vunpack.c.l.b16 %v426
  %v705 = vunpack.c.h.b16 %v426
  %v706 = vunpack.c.l.b16 %v427
  %v707 = vunpack.c.l.b16 %v428
  %v708 = vunpack.c.h.b16 %v428
  %v709 = vunpack.c.l.b16 %v429
  %v710 = vunpack.c.l.b16 %v430
  %v711 = vunpack.c.h.b16 %v430
  %v712 = vunpack.c.l.b16 %v431
  %v713 = vunpack.c.l.b16 %v432
  %v714 = vunpack.c.h.b16 %v432
  %v715 = vunpack.c.l.b16 %v433
  %v716 = vunpack.c.l.b16 %v434
  %v717 = vunpack.c.h.b16 %v434
  %v718 = vunpack.c.l.b16 %v435
  %v719 = vunpack.c.l.b16 %v436
  %v720 = vunpack.c.h.b16 %v436
  %v721 = vunpack.c.l.b16 %v437
  %v722 = vunpack.c.l.b16 %v438
  %v723 = vunpack.c.h.b16 %v438
  %v724 = vunpack.c.l.b16 %v439
  %v725 = vunpack.c.l.b16 %v440
  %v726 = vunpack.c.h.b16 %v440
  %v727 = vunpack.c.l.b16 %v441
  %v728 = vunpack.c.l.b16 %v442
  %v729 = vunpack.c.h.b16 %v442
  %v730 = vunpack.c.l.b16 %v443
  %v731 = vunpack.c.l.b16 %v444
  %v732 = vunpack.c.h.b16 %v444
  %v733 = vunpack.c.l.b16 %v445
  %v734 = vunpack.c.l.b16 %v446
  %v735 = vunpack.c.h.b16 %v446
  %v736 = vunpack.c.l.b16 %v447
  %v737 = vunpack.c.l.b16 %v448
  %v738 = vunpack.c.h.b16 %v448
  %v739 = vunpack.c.l.b16 %v449
  %v740 = vunpack.c.l.b16 %v450
  %v741 = vunpack.c.h.b16 %v450
  %v742 = vunpack.c.l.b16 %v451
  %v743 = vunpack.c.l.b16 %v452
  %v744 = vunpack.c.h.b16 %v452
  %v745 = vunpack.c.l.b16 %v453
  %v746 = vunpack.c.l.b16 %v454
  %v747 = vunpack.c.h.b16 %v454
  %v748 = vunpack.c.l.b16 %v455
  %v749 = vunpack.c.l.b16 %v456
  %v750 = vunpack.c.h.b16 %v456
  %v751 = vunpack.c.l.b16 %v457
  %v752 = vunpack.c.l.b16 %v458
  %v753 = vunpack.c.h.b16 %v458
  %v754 = vunpack.c.l.b16 %v459
  %v755 = vunpack.c.l.b16 %v460
  %v756 = vunpack.c.h.b16 %v460
  %v757 = vunpack.c.l.b16 %v461
  %v758 = vunpack.c.l.b16 %v462
  %v759 = vunpack.c.h.b16 %v462
  %v760 = vunpack.c.l.b16 %v463
  %v761 = vunpack.c.l.b16 %v464
  %v762 = vunpack.c.h.b16 %v464
  %v763 = vunpack.c.l.b16 %v465
  %v764 = vunpack.c.l.b16 %v466
  %v765 = vunpack.c.h.b16 %v466
  %v766 = vunpack.c.l.b16 %v467
  %v767 = vunpack.c.l.b16 %v468
  %v768 = vunpack.c.h.b16 %v468
  %v769 = vunpack.c.l.b16 %v469
  %v770 = vunpack.c.l.b16 %v470
  %v771 = vunpack.c.h.b16 %v470
  %v772 = vunpack.c.l.b16 %v471
  %v773 = vunpack.c.l.b16 %v472
  %v774 = vunpack.c.h.b16 %v472
  %v775 = vunpack.c.l.b16 %v473
  %v776 = vunpack.c.l.b16 %v474
  %v777 = vunpack.c.h.b16 %v474
  %v778 = vunpack.c.l.b16 %v475
  %v779 = vunpack.c.l.b16 %v476
  %v780 = vunpack.c.h.b16 %v476
  %v781 = vunpack.c.l.b16 %v477
  %v782 = vunpack.c.l.b16 %v478
  %v783 = vunpack.c.h.b16 %v478
  %v784 = vunpack.c.l.b16 %v479
  %v785 = vunpack.c.l.b16 %v480
  %v786 = vunpack.c.h.b16 %v480
  %v787 = vunpack.c.l.b16 %v481
  %v788 = vunpack.c.l.b16 %v482
  %v789 = vunpack.c.h.b16 %v482
  %v790 = vunpack.c.l.b16 %v483
  %v791 = vunpack.c.l.b16 %v484
  %v792 = vunpack.c.h.b16 %v484
  %v793 = vunpack.c.l.b16 %v485
  %v794 = vunpack.c.l.b16 %v486
  %v795 = vunpack.c.h.b16 %v486
  %v796 = vunpack.c.l.b16 %v487
  %v797 = vunpack.c.l.b16 %v488
  %v798 = vunpack.c.h.b16 %v488
  %v799 = vunpack.c.l.b16 %v489
  %v800 = vunpack.c.l.b16 %v490
  %v801 = vunpack.c.h.b16 %v490
  %v802 = vunpack.c.l.b16 %v491
  %v803 = vunpack.c.l.b16 %v492
  %v804 = vunpack.c.h.b16 %v492
  %v805 = vunpack.c.l.b16 %v493
  %v806 = vunpack.c.l.b16 %v494
  %v807 = vunpack.c.h.b16 %v494
  %v808 = vunpack.c.l.b16 %v495
  %v809 = vunpack.c.l.b16 %v496
  %v810 = vunpack.c.h.b16 %v496
  %v811 = vunpack.c.l.b16 %v497
  %v812 = vunpack.c.l.b16 %v498
  %v813 = vunpack.c.h.b16 %v498
  %v814 = vunpack.c.l.b16 %v499
  %v815 = vunpack.c.l.b16 %v500
  %v816 = vunpack.c.h.b16 %v500
  %v817 = vunpack.c.l.b16 %v501
  %v818 = vunpack.c.l.b16 %v502
  %v819 = vunpack.c.h.b16 %v502
  %v820 = vunpack.c.l.b16 %v503
  %v821 = vunpack.c.l.b16 %v504
  %v822 = vunpack.c.h.b16 %v504
  %v823 = vunpack.c.l.b16 %v505
  %v824 = vunpack.c.l.b16 %v506
  %v825 = vunpack.c.h.b16 %v506
  %v826 = vunpack.c.l.b16 %v507
  %v827 = vunpack.c.l.b16 %v508
  %v828 = vunpack.c.h.b16 %v508
  %v829 = vunpack.c.l.b16 %v509
  %v830 = vunpack.c.l.b16 %v510
  %v831 = vunpack.c.h.b16 %v510
  %v832 = vunpack.c.l.b16 %v511
  %v833 = vunpack.c.l.b16 %v512
  %v834 = vunpack.c.h.b16 %v512
  %v835 = vunpack.c.l.b16 %v513
  %v836 = vunpack.c.l.b16 %v514
  %v837 = vunpack.c.h.b16 %v514
  %v838 = vunpack.c.l.b16 %v515
  %v839 = vunpack.c.l.b16 %v516
  %v840 = vunpack.c.h.b16 %v516
  %v841 = vunpack.c.l.b16 %v517
  %v842 = vunpack.c.l.b16 %v518
  %v843 = vunpack.c.h.b16 %v518
  %v844 = vunpack.c.l.b16 %v519
  %v845 = vunpack.c.l.b16 %v520
  %v846 = vunpack.c.h.b16 %v520
  %v847 = vunpack.c.l.b16 %v521
  %v848 = vunpack.c.l.b16 %v522
  %v849 = vunpack.c.h.b16 %v522
  %v850 = vunpack.c.l.b16 %v523
  %v851 = vunpack.c.l.b16 %v524
  %v852 = vunpack.c.h.b16 %v524
  %v853 = vunpack.c.l.b16 %v525
  %v854 = vpack.c.b16 %v665, %v662
  %v855 = vpack.c.b16 %v666, %v663
  %v856 = vpack.c.b16 %v667, %v664
  %v857 = vpack.c.b16 %v671, %v668
  %v858 = vpack.c.b16 %v672, %v669
  %v859 = vpack.c.b16 %v673, %v670
  %v860 = vpack.c.b16 %v677, %v674
  %v861 = vpack.c.b16 %v678, %v675
  %v862 = vpack.c.b16 %v679, %v676
  %v863 = vpack.c.b16 %v683, %v680
  %v864 = vpack.c.b16 %v684, %v681
  %v865 = vpack.c.b16 %v685, %v682
  %v866 = vpack.c.b16 %v689, %v686
  %v867 = vpack.c.b16 %v690, %v687
  %v868 = vpack.c.b16 %v691, %v688
  %v869 = vpack.c.b16 %v695, %v692
  %v870 = vpack.c.b16 %v696, %v693
  %v871 = vpack.c.b16 %v697, %v694
  %v872 = vpack.c.b16 %v701, %v698
  %v873 = vpack.c.b16 %v702, %v699
  %v874 = vpack.c.b16 %v703, %v700
  %v875 = vpack.c.b16 %v707, %v704
  %v876 = vpack.c.b16 %v708, %v705
  %v877 = vpack.c.b16 %v709, %v706
  %v878 = vpack.c.b16 %v713, %v710
  %v879 = vpack.c.b16 %v714, %v711
  %v880 = vpack.c.b16 %v715, %v712
  %v881 = vpack.c.b16 %v719, %v716
  %v882 = vpack.c.b16 %v720, %v717
  %v883 = vpack.c.b16 %v721, %v718
  %v884 = vpack.c.b16 %v725, %v722
  %v885 = vpack.c.b16 %v726, %v723
  %v886 = vpack.c.b16 %v727, %v724
  %v887 = vpack.c.b16 %v731, %v728
  %v888 = vpack.c.b16 %v732, %v729
  %v889 = vpack.c.b16 %v733, %v730
  %v890 = vpack.c.b16 %v737, %v734
  %v891 = vpack.c.b16 %v738, %v735
  %v892 = vpack.c.b16 %v739, %v736
  %v893 = vpack.c.b16 %v743, %v740
  %v894 = vpack.c.b16 %v744, %v741
  %v895 = vpack.c.b16 %v745, %v742
  %v896 = vpack.c.b16 %v749, %v746
  %v897 = vpack.c.b16 %v750, %v747
  %v898 = vpack.c.b16 %v751, %v748
  %v899 = vpack.c.b16 %v755, %v752
  %v900 = vpack.c.b16 %v756, %v753
  %v901 = vpack.c.b16 %v757, %v754
  %v902 = vpack.c.b16 %v761, %v758
  %v903 = vpack.c.b16 %v762, %v759
  %v904 = vpack.c.b16 %v763, %v760
  %v905 = vpack.c.b16 %v767, %v764
  %v906 = vpack.c.b16 %v768, %v765
  %v907 = vpack.c.b16 %v769, %v766
  %v908 = vpack.c.b16 %v773, %v770
  %v909 = vpack.c.b16 %v774, %v771
  %v910 = vpack.c.b16 %v775, %v772
  %v911 = vpack.c.b16 %v779, %v776
  %v912 = vpack.c.b16 %v780, %v777
  %v913 = vpack.c.b16 %v781, %v778
  %v914 = vpack.c.b16 %v785, %v782
  %v915 = vpack.c.b16 %v786, %v783
  %v916 = vpack.c.b16 %v787, %v784
  %v917 = vpack.c.b16 %v791, %v788
  %v918 = vpack.c.b16 %v792, %v789
  %v919 = vpack.c.b16 %v793, %v790
  %v920 = vpack.c.b16 %v797, %v794
  %v921 = vpack.c.b16 %v798, %v795
  %v922 = vpack.c.b16 %v799, %v796
  %v923 = vpack.c.b16 %v803, %v800
  %v924 = vpack.c.b16 %v804, %v801
  %v925 = vpack.c.b16 %v805, %v802
  %v926 = vpack.c.b16 %v809, %v806
  %v927 = vpack.c.b16 %v810, %v807
  %v928 = vpack.c.b16 %v811, %v808
  %v929 = vpack.c.b16 %v815, %v812
  %v930 = vpack.c.b16 %v816, %v813
  %v931 = vpack.c.b16 %v817, %v814
  %v932 = vpack.c.b16 %v821, %v818
  %v933 = vpack.c.b16 %v822, %v819
  %v934 = vpack.c.b16 %v823, %v820
  %v935 = vpack.c.b16 %v827, %v824
  %v936 = vpack.c.b16 %v828, %v825
  %v937 = vpack.c.b16 %v829, %v826
  %v938 = vpack.c.b16 %v833, %v830
  %v939 = vpack.c.b16 %v834, %v831
  %v940 = vpack.c.b16 %v835, %v832
  %v941 = vpack.c.b16 %v839, %v836
  %v942 = vpack.c.b16 %v840, %v837
  %v943 = vpack.c.b16 %v841, %v838
  %v944 = vpack.c.b16 %v845, %v842
  %v945 = vpack.c.b16 %v846, %v843
  %v946 = vpack.c.b16 %v847, %v844
  %v947 = vpack.c.b16 %v851, %v848
  %v948 = vpack.c.b16 %v852, %v849
  %v949 = vpack.c.b16 %v853, %v850
  %1046 = vmatpush.bf16.msra.mxu0 %v875
  %1047 = vmatpush.bf16.msra.mxu0 %v872
  %1048 = vmatpush.bf16.msra.mxu0 %v869
  %1049 = vmatpush.bf16.msra.mxu0 %v866
  %1050 = vmatpush.bf16.msra.mxu0 %v863
  %1051 = vmatpush.bf16.msra.mxu0 %v860
  %1052 = vmatpush.bf16.msra.mxu0 %v857
  %1053 = vmatpush.bf16.msra.mxu0 %v854
  %1054 = vmatmul.bf16.gmra.mxu0 %v390
  %v1055 = vpop.f32.mrf.mxu0
  %v1056 = vadd.f32 %v528, %v1055
  %v1057 = vpop.f32.mrf.mxu0
  %1058 = vdwg.mxu0
  %1059 = vmatpush.bf16.msra.mxu0 %v899
  %1060 = vmatpush.bf16.msra.mxu0 %v896
  %1061 = vmatpush.bf16.msra.mxu0 %v893
  %1062 = vmatpush.bf16.msra.mxu0 %v890
  %1063 = vmatpush.bf16.msra.mxu0 %v887
  %1064 = vmatpush.bf16.msra.mxu0 %v884
  %1065 = vmatpush.bf16.msra.mxu0 %v881
  %1066 = vmatpush.bf16.msra.mxu0 %v878
  %1067 = vmatmul.bf16.gmra.mxu0 %v391
  %v1068 = vpop.f32.mrf.mxu0
  %v1069 = vadd.f32 %v1056, %v1068
  %v1070 = vpop.f32.mrf.mxu0
  %1071 = vdwg.mxu0
  %1072 = vmatpush.bf16.msra.mxu0 %v923
  %1073 = vmatpush.bf16.msra.mxu0 %v920
  %1074 = vmatpush.bf16.msra.mxu0 %v917
  %1075 = vmatpush.bf16.msra.mxu0 %v914
  %1076 = vmatpush.bf16.msra.mxu0 %v911
  %1077 = vmatpush.bf16.msra.mxu0 %v908
  %1078 = vmatpush.bf16.msra.mxu0 %v905
  %1079 = vmatpush.bf16.msra.mxu0 %v902
  %1080 = vmatmul.bf16.gmra.mxu0 %v392
  %v1081 = vpop.f32.mrf.mxu0
  %v1082 = vadd.f32 %v1069, %v1081
  %v1083 = vpop.f32.mrf.mxu0
  %1084 = vdwg.mxu0
  %1085 = vmatpush.bf16.msra.mxu0 %v947
  %1086 = vmatpush.bf16.msra.mxu0 %v944
  %1087 = vmatpush.bf16.msra.mxu0 %v941
  %1088 = vmatpush.bf16.msra.mxu0 %v938
  %1089 = vmatpush.bf16.msra.mxu0 %v935
  %1090 = vmatpush.bf16.msra.mxu0 %v932
  %1091 = vmatpush.bf16.msra.mxu0 %v929
  %1092 = vmatpush.bf16.msra.mxu0 %v926
  %1093 = vmatmul.bf16.gmra.mxu0 %v393
  %v1094 = vpop.f32.mrf.mxu0
  %v1095 = vadd.f32 %v1082, %v1094
  %v1096 = vpop.f32.mrf.mxu0
  %1097 = vdwg.mxu0
  %1098 = vmatpush.bf16.msra.mxu0 %v876
  %1099 = vmatpush.bf16.msra.mxu0 %v873
  %1100 = vmatpush.bf16.msra.mxu0 %v870
  %1101 = vmatpush.bf16.msra.mxu0 %v867
  %1102 = vmatpush.bf16.msra.mxu0 %v864
  %1103 = vmatpush.bf16.msra.mxu0 %v861
  %1104 = vmatpush.bf16.msra.mxu0 %v858
  %1105 = vmatpush.bf16.msra.mxu0 %v855
  %1106 = vmatmul.bf16.gmra.mxu0 %v390
  %v1107 = vpop.f32.mrf.mxu0
  %v1108 = vadd.f32 %v529, %v1107
  %v1109 = vpop.f32.mrf.mxu0
  %1110 = vdwg.mxu0
  %1111 = vmatpush.bf16.msra.mxu0 %v900
  %1112 = vmatpush.bf16.msra.mxu0 %v897
  %1113 = vmatpush.bf16.msra.mxu0 %v894
  %1114 = vmatpush.bf16.msra.mxu0 %v891
  %1115 = vmatpush.bf16.msra.mxu0 %v888
  %1116 = vmatpush.bf16.msra.mxu0 %v885
  %1117 = vmatpush.bf16.msra.mxu0 %v882
  %1118 = vmatpush.bf16.msra.mxu0 %v879
  %1119 = vmatmul.bf16.gmra.mxu0 %v391
  %v1120 = vpop.f32.mrf.mxu0
  %v1121 = vadd.f32 %v1108, %v1120
  %v1122 = vpop.f32.mrf.mxu0
  %1123 = vdwg.mxu0
  %1124 = vmatpush.bf16.msra.mxu0 %v924
  %1125 = vmatpush.bf16.msra.mxu0 %v921
  %1126 = vmatpush.bf16.msra.mxu0 %v918
  %1127 = vmatpush.bf16.msra.mxu0 %v915
  %1128 = vmatpush.bf16.msra.mxu0 %v912
  %1129 = vmatpush.bf16.msra.mxu0 %v909
  %1130 = vmatpush.bf16.msra.mxu0 %v906
  %1131 = vmatpush.bf16.msra.mxu0 %v903
  %1132 = vmatmul.bf16.gmra.mxu0 %v392
  %v1133 = vpop.f32.mrf.mxu0
  %v1134 = vadd.f32 %v1121, %v1133
  %v1135 = vpop.f32.mrf.mxu0
  %1136 = vdwg.mxu0
  %1137 = vmatpush.bf16.msra.mxu0 %v948
  %1138 = vmatpush.bf16.msra.mxu0 %v945
  %1139 = vmatpush.bf16.msra.mxu0 %v942
  %1140 = vmatpush.bf16.msra.mxu0 %v939
  %1141 = vmatpush.bf16.msra.mxu0 %v936
  %1142 = vmatpush.bf16.msra.mxu0 %v933
  %1143 = vmatpush.bf16.msra.mxu0 %v930
  %1144 = vmatpush.bf16.msra.mxu0 %v927
  %1145 = vmatmul.bf16.gmra.mxu0 %v393
  %v1146 = vpop.f32.mrf.mxu0
  %v1147 = vadd.f32 %v1134, %v1146
  %v1148 = vpop.f32.mrf.mxu0
  %1149 = vdwg.mxu0
  %1150 = vmatpush.bf16.msra.mxu0 %v877
  %1151 = vmatpush.bf16.msra.mxu0 %v874
  %1152 = vmatpush.bf16.msra.mxu0 %v871
  %1153 = vmatpush.bf16.msra.mxu0 %v868
  %1154 = vmatpush.bf16.msra.mxu0 %v865
  %1155 = vmatpush.bf16.msra.mxu0 %v862
  %1156 = vmatpush.bf16.msra.mxu0 %v859
  %1157 = vmatpush.bf16.msra.mxu0 %v856
  %1158 = vmatmul.bf16.gmra.mxu0 %v390
  %v1159 = vpop.f32.mrf.mxu0
  %v1160 = vadd.f32 %v530, %v1159
  %v1161 = vpop.f32.mrf.mxu0
  %1162 = vdwg.mxu0
  %1163 = vmatpush.bf16.msra.mxu0 %v901
  %1164 = vmatpush.bf16.msra.mxu0 %v898
  %1165 = vmatpush.bf16.msra.mxu0 %v895
  %1166 = vmatpush.bf16.msra.mxu0 %v892
  %1167 = vmatpush.bf16.msra.mxu0 %v889
  %1168 = vmatpush.bf16.msra.mxu0 %v886
  %1169 = vmatpush.bf16.msra.mxu0 %v883
  %1170 = vmatpush.bf16.msra.mxu0 %v880
  %1171 = vmatmul.bf16.gmra.mxu0 %v391
  %v1172 = vpop.f32.mrf.mxu0
  %v1173 = vadd.f32 %v1160, %v1172
  %v1174 = vpop.f32.mrf.mxu0
  %1175 = vdwg.mxu0
  %1176 = vmatpush.bf16.msra.mxu0 %v925
  %1177 = vmatpush.bf16.msra.mxu0 %v922
  %1178 = vmatpush.bf16.msra.mxu0 %v919
  %1179 = vmatpush.bf16.msra.mxu0 %v916
  %1180 = vmatpush.bf16.msra.mxu0 %v913
  %1181 = vmatpush.bf16.msra.mxu0 %v910
  %1182 = vmatpush.bf16.msra.mxu0 %v907
  %1183 = vmatpush.bf16.msra.mxu0 %v904
  %1184 = vmatmul.bf16.gmra.mxu0 %v392
  %v1185 = vpop.f32.mrf.mxu0
  %v1186 = vadd.f32 %v1173, %v1185
  %v1187 = vpop.f32.mrf.mxu0
  %1188 = vdwg.mxu0
  %1189 = vmatpush.bf16.msra.mxu0 %v949
  %1190 = vmatpush.bf16.msra.mxu0 %v946
  %1191 = vmatpush.bf16.msra.mxu0 %v943
  %1192 = vmatpush.bf16.msra.mxu0 %v940
  %1193 = vmatpush.bf16.msra.mxu0 %v937
  %1194 = vmatpush.bf16.msra.mxu0 %v934
  %1195 = vmatpush.bf16.msra.mxu0 %v931
  %1196 = vmatpush.bf16.msra.mxu0 %v928
  %1197 = vmatmul.bf16.gmra.mxu0 %v393
  %v1198 = vpop.f32.mrf.mxu0
  %v1199 = vadd.f32 %v1186, %v1198
  %v1200 = vpop.f32.mrf.mxu0
  %1201 = vdwg.mxu0
  %v1202 = vmax.f32 %v1095, 0.0
  %v1203 = vmax.f32 %v1147, 0.0
  %v1204 = vmax.f32 %v1199, 0.0
  %v1205 = vld [vmem:[%s7] sm:$0xff]
  %v1206 = vld [vmem:[%s7 + $0x8] sm:$0xf]
  %v1207 = vld [vmem:[%s7 + $0xc] sm:$0xff]
  %v1208 = vld [vmem:[%s7 + $0x14] sm:$0xf]
  %v1209 = vld [vmem:[%s7 + $0x18] sm:$0xff]
  %v1210 = vld [vmem:[%s7 + $0x20] sm:$0xf]
  %v1211 = vld [vmem:[%s7 + $0x24] sm:$0xff]
  %v1212 = vld [vmem:[%s7 + $0x2c] sm:$0xf]
  %v1213 = vld [vmem:[%s7 + $0x30] sm:$0xff]
  %v1214 = vld [vmem:[%s7 + $0x38] sm:$0xf]
  %v1215 = vld [vmem:[%s7 + $0x3c] sm:$0xff]
  %v1216 = vld [vmem:[%s7 + $0x44] sm:$0xf]
  %v1217 = vld [vmem:[%s7 + $0x48] sm:$0xff]
  %v1218 = vld [vmem:[%s7 + $0x50] sm:$0xf]
  %v1219 = vld [vmem:[%s7 + $0x54] sm:$0xff]
  %v1220 = vld [vmem:[%s7 + $0x5c] sm:$0xf]
  %v1221 = vld [vmem:[%s7 + $0x60] sm:$0xff]
  %v1222 = vld [vmem:[%s7 + $0x68] sm:$0xf]
  %v1223 = vld [vmem:[%s7 + $0x6c] sm:$0xff]
  %v1224 = vld [vmem:[%s7 + $0x74] sm:$0xf]
  %v1225 = vld [vmem:[%s7 + $0x78] sm:$0xff]
  %v1226 = vld [vmem:[%s7 + $0x80] sm:$0xf]
  %v1227 = vld [vmem:[%s7 + $0x84] sm:$0xff]
  %v1228 = vld [vmem:[%s7 + $0x8c] sm:$0xf]
  %v1229 = vld [vmem:[%s7 + $0x90] sm:$0xff]
  %v1230 = vld [vmem:[%s7 + $0x98] sm:$0xf]
  %v1231 = vld [vmem:[%s7 + $0x9c] sm:$0xff]
  %v1232 = vld [vmem:[%s7 + $0xa4] sm:$0xf]
  %v1233 = vld [vmem:[%s7 + $0xa8] sm:$0xff]
  %v1234 = vld [vmem:[%s7 + $0xb0] sm:$0xf]
  %v1235 = vld [vmem:[%s7 + $0xb4] sm:$0xff]
  %v1236 = vld [vmem:[%s7 + $0xbc] sm:$0xf]
  %v1237 = vld [vmem:[%s7 + $0xc0] sm:$0xff]
  %v1238 = vld [vmem:[%s7 + $0xc8] sm:$0xf]
  %v1239 = vld [vmem:[%s7 + $0xcc] sm:$0xff]
  %v1240 = vld [vmem:[%s7 + $0xd4] sm:$0xf]
  %v1241 = vld [vmem:[%s7 + $0xd8] sm:$0xff]
  %v1242 = vld [vmem:[%s7 + $0xe0] sm:$0xf]
  %v1243 = vld [vmem:[%s7 + $0xe4] sm:$0xff]
  %v1244 = vld [vmem:[%s7 + $0xec] sm:$0xf]
  %v1245 = vld [vmem:[%s7 + $0xf0] sm:$0xff]
  %v1246 = vld [vmem:[%s7 + $0xf8] sm:$0xf]
  %v1247 = vld [vmem:[%s7 + $0xfc] sm:$0xff]
  %v1248 = vld [vmem:[%s7 + $0x104] sm:$0xf]
  %v1249 = vld [vmem:[%s7 + $0x108] sm:$0xff]
  %v1250 = vld [vmem:[%s7 + $0x110] sm:$0xf]
  %v1251 = vld [vmem:[%s7 + $0x114] sm:$0xff]
  %v1252 = vld [vmem:[%s7 + $0x11c] sm:$0xf]
  %v1253 = vld [vmem:[%s7 + $0x120] sm:$0xff]
  %v1254 = vld [vmem:[%s7 + $0x128] sm:$0xf]
  %v1255 = vld [vmem:[%s7 + $0x12c] sm:$0xff]
  %v1256 = vld [vmem:[%s7 + $0x134] sm:$0xf]
  %v1257 = vld [vmem:[%s7 + $0x138] sm:$0xff]
  %v1258 = vld [vmem:[%s7 + $0x140] sm:$0xf]
  %v1259 = vld [vmem:[%s7 + $0x144] sm:$0xff]
  %v1260 = vld [vmem:[%s7 + $0x14c] sm:$0xf]
  %v1261 = vld [vmem:[%s7 + $0x150] sm:$0xff]
  %v1262 = vld [vmem:[%s7 + $0x158] sm:$0xf]
  %v1263 = vld [vmem:[%s7 + $0x15c] sm:$0xff]
  %v1264 = vld [vmem:[%s7 + $0x164] sm:$0xf]
  %v1265 = vld [vmem:[%s7 + $0x168] sm:$0xff]
  %v1266 = vld [vmem:[%s7 + $0x170] sm:$0xf]
  %v1267 = vld [vmem:[%s7 + $0x174] sm:$0xff]
  %v1268 = vld [vmem:[%s7 + $0x17c] sm:$0xf]
  %v1269 = vld [vmem:[%s7 + $0x180] sm:$0xff]
  %v1270 = vld [vmem:[%s7 + $0x188] sm:$0xf]
  %v1271 = vld [vmem:[%s7 + $0x18c] sm:$0xff]
  %v1272 = vld [vmem:[%s7 + $0x194] sm:$0xf]
  %v1273 = vld [vmem:[%s7 + $0x198] sm:$0xff]
  %v1274 = vld [vmem:[%s7 + $0x1a0] sm:$0xf]
  %v1275 = vld [vmem:[%s7 + $0x1a4] sm:$0xff]
  %v1276 = vld [vmem:[%s7 + $0x1ac] sm:$0xf]
  %v1277 = vld [vmem:[%s7 + $0x1b0] sm:$0xff]
  %v1278 = vld [vmem:[%s7 + $0x1b8] sm:$0xf]
  %v1279 = vld [vmem:[%s7 + $0x1bc] sm:$0xff]
  %v1280 = vld [vmem:[%s7 + $0x1c4] sm:$0xf]
  %v1281 = vld [vmem:[%s7 + $0x1c8] sm:$0xff]
  %v1282 = vld [vmem:[%s7 + $0x1d0] sm:$0xf]
  %v1283 = vld [vmem:[%s7 + $0x1d4] sm:$0xff]
  %v1284 = vld [vmem:[%s7 + $0x1dc] sm:$0xf]
  %v1285 = vld [vmem:[%s7 + $0x1e0] sm:$0xff]
  %v1286 = vld [vmem:[%s7 + $0x1e8] sm:$0xf]
  %v1287 = vld [vmem:[%s7 + $0x1ec] sm:$0xff]
  %v1288 = vld [vmem:[%s7 + $0x1f4] sm:$0xf]
  %v1289 = vld [vmem:[%s7 + $0x1f8] sm:$0xff]
  %v1290 = vld [vmem:[%s7 + $0x200] sm:$0xf]
  %v1291 = vld [vmem:[%s7 + $0x204] sm:$0xff]
  %v1292 = vld [vmem:[%s7 + $0x20c] sm:$0xf]
  %v1293 = vld [vmem:[%s7 + $0x210] sm:$0xff]
  %v1294 = vld [vmem:[%s7 + $0x218] sm:$0xf]
  %v1295 = vld [vmem:[%s7 + $0x21c] sm:$0xff]
  %v1296 = vld [vmem:[%s7 + $0x224] sm:$0xf]
  %v1297 = vld [vmem:[%s7 + $0x228] sm:$0xff]
  %v1298 = vld [vmem:[%s7 + $0x230] sm:$0xf]
  %v1299 = vld [vmem:[%s7 + $0x234] sm:$0xff]
  %v1300 = vld [vmem:[%s7 + $0x23c] sm:$0xf]
  %v1301 = vld [vmem:[%s7 + $0x240] sm:$0xff]
  %v1302 = vld [vmem:[%s7 + $0x248] sm:$0xf]
  %v1303 = vld [vmem:[%s7 + $0x24c] sm:$0xff]
  %v1304 = vld [vmem:[%s7 + $0x254] sm:$0xf]
  %v1305 = vld [vmem:[%s7 + $0x258] sm:$0xff]
  %v1306 = vld [vmem:[%s7 + $0x260] sm:$0xf]
  %v1307 = vld [vmem:[%s7 + $0x264] sm:$0xff]
  %v1308 = vld [vmem:[%s7 + $0x26c] sm:$0xf]
  %v1309 = vld [vmem:[%s7 + $0x270] sm:$0xff]
  %v1310 = vld [vmem:[%s7 + $0x278] sm:$0xf]
  %v1311 = vld [vmem:[%s7 + $0x27c] sm:$0xff]
  %v1312 = vld [vmem:[%s7 + $0x284] sm:$0xf]
  %v1313 = vld [vmem:[%s7 + $0x288] sm:$0xff]
  %v1314 = vld [vmem:[%s7 + $0x290] sm:$0xf]
  %v1315 = vld [vmem:[%s7 + $0x294] sm:$0xff]
  %v1316 = vld [vmem:[%s7 + $0x29c] sm:$0xf]
  %v1317 = vld [vmem:[%s7 + $0x2a0] sm:$0xff]
  %v1318 = vld [vmem:[%s7 + $0x2a8] sm:$0xf]
  %v1319 = vld [vmem:[%s7 + $0x2ac] sm:$0xff]
  %v1320 = vld [vmem:[%s7 + $0x2b4] sm:$0xf]
  %v1321 = vld [vmem:[%s7 + $0x2b8] sm:$0xff]
  %v1322 = vld [vmem:[%s7 + $0x2c0] sm:$0xf]
  %v1323 = vld [vmem:[%s7 + $0x2c4] sm:$0xff]
  %v1324 = vld [vmem:[%s7 + $0x2cc] sm:$0xf]
  %v1325 = vld [vmem:[%s7 + $0x2d0] sm:$0xff]
  %v1326 = vld [vmem:[%s7 + $0x2d8] sm:$0xf]
  %v1327 = vld [vmem:[%s7 + $0x2dc] sm:$0xff]
  %v1328 = vld [vmem:[%s7 + $0x2e4] sm:$0xf]
  %v1329 = vld [vmem:[%s7 + $0x2e8] sm:$0xff]
  %v1330 = vld [vmem:[%s7 + $0x2f0] sm:$0xf]
  %v1331 = vld [vmem:[%s7 + $0x2f4] sm:$0xff]
  %v1332 = vld [vmem:[%s7 + $0x2fc] sm:$0xf]
  %v1333 = vld [vmem:[%s8] sm:$0x7]
  %v1335 = vperm.slane %v1333, 0
  %v1336 = vperm.slane %v1333, 1
  %v1337 = vperm.slane %v1333, 2
  %v1469 = vunpack.c.l.b16 %v1205
  %v1470 = vunpack.c.h.b16 %v1205
  %v1471 = vunpack.c.l.b16 %v1206
  %v1472 = vunpack.c.l.b16 %v1207
  %v1473 = vunpack.c.h.b16 %v1207
  %v1474 = vunpack.c.l.b16 %v1208
  %v1475 = vunpack.c.l.b16 %v1209
  %v1476 = vunpack.c.h.b16 %v1209
  %v1477 = vunpack.c.l.b16 %v1210
  %v1478 = vunpack.c.l.b16 %v1211
  %v1479 = vunpack.c.h.b16 %v1211
  %v1480 = vunpack.c.l.b16 %v1212
  %v1481 = vunpack.c.l.b16 %v1213
  %v1482 = vunpack.c.h.b16 %v1213
  %v1483 = vunpack.c.l.b16 %v1214
  %v1484 = vunpack.c.l.b16 %v1215
  %v1485 = vunpack.c.h.b16 %v1215
  %v1486 = vunpack.c.l.b16 %v1216
  %v1487 = vunpack.c.l.b16 %v1217
  %v1488 = vunpack.c.h.b16 %v1217
  %v1489 = vunpack.c.l.b16 %v1218
  %v1490 = vunpack.c.l.b16 %v1219
  %v1491 = vunpack.c.h.b16 %v1219
  %v1492 = vunpack.c.l.b16 %v1220
  %v1493 = vunpack.c.l.b16 %v1221
  %v1494 = vunpack.c.h.b16 %v1221
  %v1495 = vunpack.c.l.b16 %v1222
  %v1496 = vunpack.c.l.b16 %v1223
  %v1497 = vunpack.c.h.b16 %v1223
  %v1498 = vunpack.c.l.b16 %v1224
  %v1499 = vunpack.c.l.b16 %v1225
  %v1500 = vunpack.c.h.b16 %v1225
  %v1501 = vunpack.c.l.b16 %v1226
  %v1502 = vunpack.c.l.b16 %v1227
  %v1503 = vunpack.c.h.b16 %v1227
  %v1504 = vunpack.c.l.b16 %v1228
  %v1505 = vunpack.c.l.b16 %v1229
  %v1506 = vunpack.c.h.b16 %v1229
  %v1507 = vunpack.c.l.b16 %v1230
  %v1508 = vunpack.c.l.b16 %v1231
  %v1509 = vunpack.c.h.b16 %v1231
  %v1510 = vunpack.c.l.b16 %v1232
  %v1511 = vunpack.c.l.b16 %v1233
  %v1512 = vunpack.c.h.b16 %v1233
  %v1513 = vunpack.c.l.b16 %v1234
  %v1514 = vunpack.c.l.b16 %v1235
  %v1515 = vunpack.c.h.b16 %v1235
  %v1516 = vunpack.c.l.b16 %v1236
  %v1517 = vunpack.c.l.b16 %v1237
  %v1518 = vunpack.c.h.b16 %v1237
  %v1519 = vunpack.c.l.b16 %v1238
  %v1520 = vunpack.c.l.b16 %v1239
  %v1521 = vunpack.c.h.b16 %v1239
  %v1522 = vunpack.c.l.b16 %v1240
  %v1523 = vunpack.c.l.b16 %v1241
  %v1524 = vunpack.c.h.b16 %v1241
  %v1525 = vunpack.c.l.b16 %v1242
  %v1526 = vunpack.c.l.b16 %v1243
  %v1527 = vunpack.c.h.b16 %v1243
  %v1528 = vunpack.c.l.b16 %v1244
  %v1529 = vunpack.c.l.b16 %v1245
  %v1530 = vunpack.c.h.b16 %v1245
  %v1531 = vunpack.c.l.b16 %v1246
  %v1532 = vunpack.c.l.b16 %v1247
  %v1533 = vunpack.c.h.b16 %v1247
  %v1534 = vunpack.c.l.b16 %v1248
  %v1535 = vunpack.c.l.b16 %v1249
  %v1536 = vunpack.c.h.b16 %v1249
  %v1537 = vunpack.c.l.b16 %v1250
  %v1538 = vunpack.c.l.b16 %v1251
  %v1539 = vunpack.c.h.b16 %v1251
  %v1540 = vunpack.c.l.b16 %v1252
  %v1541 = vunpack.c.l.b16 %v1253
  %v1542 = vunpack.c.h.b16 %v1253
  %v1543 = vunpack.c.l.b16 %v1254
  %v1544 = vunpack.c.l.b16 %v1255
  %v1545 = vunpack.c.h.b16 %v1255
  %v1546 = vunpack.c.l.b16 %v1256
  %v1547 = vunpack.c.l.b16 %v1257
  %v1548 = vunpack.c.h.b16 %v1257
  %v1549 = vunpack.c.l.b16 %v1258
  %v1550 = vunpack.c.l.b16 %v1259
  %v1551 = vunpack.c.h.b16 %v1259
  %v1552 = vunpack.c.l.b16 %v1260
  %v1553 = vunpack.c.l.b16 %v1261
  %v1554 = vunpack.c.h.b16 %v1261
  %v1555 = vunpack.c.l.b16 %v1262
  %v1556 = vunpack.c.l.b16 %v1263
  %v1557 = vunpack.c.h.b16 %v1263
  %v1558 = vunpack.c.l.b16 %v1264
  %v1559 = vunpack.c.l.b16 %v1265
  %v1560 = vunpack.c.h.b16 %v1265
  %v1561 = vunpack.c.l.b16 %v1266
  %v1562 = vunpack.c.l.b16 %v1267
  %v1563 = vunpack.c.h.b16 %v1267
  %v1564 = vunpack.c.l.b16 %v1268
  %v1565 = vunpack.c.l.b16 %v1269
  %v1566 = vunpack.c.h.b16 %v1269
  %v1567 = vunpack.c.l.b16 %v1270
  %v1568 = vunpack.c.l.b16 %v1271
  %v1569 = vunpack.c.h.b16 %v1271
  %v1570 = vunpack.c.l.b16 %v1272
  %v1571 = vunpack.c.l.b16 %v1273
  %v1572 = vunpack.c.h.b16 %v1273
  %v1573 = vunpack.c.l.b16 %v1274
  %v1574 = vunpack.c.l.b16 %v1275
  %v1575 = vunpack.c.h.b16 %v1275
  %v1576 = vunpack.c.l.b16 %v1276
  %v1577 = vunpack.c.l.b16 %v1277
  %v1578 = vunpack.c.h.b16 %v1277
  %v1579 = vunpack.c.l.b16 %v1278
  %v1580 = vunpack.c.l.b16 %v1279
  %v1581 = vunpack.c.h.b16 %v1279
  %v1582 = vunpack.c.l.b16 %v1280
  %v1583 = vunpack.c.l.b16 %v1281
  %v1584 = vunpack.c.h.b16 %v1281
  %v1585 = vunpack.c.l.b16 %v1282
  %v1586 = vunpack.c.l.b16 %v1283
  %v1587 = vunpack.c.h.b16 %v1283
  %v1588 = vunpack.c.l.b16 %v1284
  %v1589 = vunpack.c.l.b16 %v1285
  %v1590 = vunpack.c.h.b16 %v1285
  %v1591 = vunpack.c.l.b16 %v1286
  %v1592 = vunpack.c.l.b16 %v1287
  %v1593 = vunpack.c.h.b16 %v1287
  %v1594 = vunpack.c.l.b16 %v1288
  %v1595 = vunpack.c.l.b16 %v1289
  %v1596 = vunpack.c.h.b16 %v1289
  %v1597 = vunpack.c.l.b16 %v1290
  %v1598 = vunpack.c.l.b16 %v1291
  %v1599 = vunpack.c.h.b16 %v1291
  %v1600 = vunpack.c.l.b16 %v1292
  %v1601 = vunpack.c.l.b16 %v1293
  %v1602 = vunpack.c.h.b16 %v1293
  %v1603 = vunpack.c.l.b16 %v1294
  %v1604 = vunpack.c.l.b16 %v1295
  %v1605 = vunpack.c.h.b16 %v1295
  %v1606 = vunpack.c.l.b16 %v1296
  %v1607 = vunpack.c.l.b16 %v1297
  %v1608 = vunpack.c.h.b16 %v1297
  %v1609 = vunpack.c.l.b16 %v1298
  %v1610 = vunpack.c.l.b16 %v1299
  %v1611 = vunpack.c.h.b16 %v1299
  %v1612 = vunpack.c.l.b16 %v1300
  %v1613 = vunpack.c.l.b16 %v1301
  %v1614 = vunpack.c.h.b16 %v1301
  %v1615 = vunpack.c.l.b16 %v1302
  %v1616 = vunpack.c.l.b16 %v1303
  %v1617 = vunpack.c.h.b16 %v1303
  %v1618 = vunpack.c.l.b16 %v1304
  %v1619 = vunpack.c.l.b16 %v1305
  %v1620 = vunpack.c.h.b16 %v1305
  %v1621 = vunpack.c.l.b16 %v1306
  %v1622 = vunpack.c.l.b16 %v1307
  %v1623 = vunpack.c.h.b16 %v1307
  %v1624 = vunpack.c.l.b16 %v1308
  %v1625 = vunpack.c.l.b16 %v1309
  %v1626 = vunpack.c.h.b16 %v1309
  %v1627 = vunpack.c.l.b16 %v1310
  %v1628 = vunpack.c.l.b16 %v1311
  %v1629 = vunpack.c.h.b16 %v1311
  %v1630 = vunpack.c.l.b16 %v1312
  %v1631 = vunpack.c.l.b16 %v1313
  %v1632 = vunpack.c.h.b16 %v1313
  %v1633 = vunpack.c.l.b16 %v1314
  %v1634 = vunpack.c.l.b16 %v1315
  %v1635 = vunpack.c.h.b16 %v1315
  %v1636 = vunpack.c.l.b16 %v1316
  %v1637 = vunpack.c.l.b16 %v1317
  %v1638 = vunpack.c.h.b16 %v1317
  %v1639 = vunpack.c.l.b16 %v1318
  %v1640 = vunpack.c.l.b16 %v1319
  %v1641 = vunpack.c.h.b16 %v1319
  %v1642 = vunpack.c.l.b16 %v1320
  %v1643 = vunpack.c.l.b16 %v1321
  %v1644 = vunpack.c.h.b16 %v1321
  %v1645 = vunpack.c.l.b16 %v1322
  %v1646 = vunpack.c.l.b16 %v1323
  %v1647 = vunpack.c.h.b16 %v1323
  %v1648 = vunpack.c.l.b16 %v1324
  %v1649 = vunpack.c.l.b16 %v1325
  %v1650 = vunpack.c.h.b16 %v1325
  %v1651 = vunpack.c.l.b16 %v1326
  %v1652 = vunpack.c.l.b16 %v1327
  %v1653 = vunpack.c.h.b16 %v1327
  %v1654 = vunpack.c.l.b16 %v1328
  %v1655 = vunpack.c.l.b16 %v1329
  %v1656 = vunpack.c.h.b16 %v1329
  %v1657 = vunpack.c.l.b16 %v1330
  %v1658 = vunpack.c.l.b16 %v1331
  %v1659 = vunpack.c.h.b16 %v1331
  %v1660 = vunpack.c.l.b16 %v1332
  %v1661 = vpack.c.b16 %v1472, %v1469
  %v1662 = vpack.c.b16 %v1473, %v1470
  %v1663 = vpack.c.b16 %v1474, %v1471
  %v1664 = vpack.c.b16 %v1478, %v1475
  %v1665 = vpack.c.b16 %v1479, %v1476
  %v1666 = vpack.c.b16 %v1480, %v1477
  %v1667 = vpack.c.b16 %v1484, %v1481
  %v1668 = vpack.c.b16 %v1485, %v1482
  %v1669 = vpack.c.b16 %v1486, %v1483
  %v1670 = vpack.c.b16 %v1490, %v1487
  %v1671 = vpack.c.b16 %v1491, %v1488
  %v1672 = vpack.c.b16 %v1492, %v1489
  %v1673 = vpack.c.b16 %v1496, %v1493
  %v1674 = vpack.c.b16 %v1497, %v1494
  %v1675 = vpack.c.b16 %v1498, %v1495
  %v1676 = vpack.c.b16 %v1502, %v1499
  %v1677 = vpack.c.b16 %v1503, %v1500
  %v1678 = vpack.c.b16 %v1504, %v1501
  %v1679 = vpack.c.b16 %v1508, %v1505
  %v1680 = vpack.c.b16 %v1509, %v1506
  %v1681 = vpack.c.b16 %v1510, %v1507
  %v1682 = vpack.c.b16 %v1514, %v1511
  %v1683 = vpack.c.b16 %v1515, %v1512
  %v1684 = vpack.c.b16 %v1516, %v1513
  %v1685 = vpack.c.b16 %v1520, %v1517
  %v1686 = vpack.c.b16 %v1521, %v1518
  %v1687 = vpack.c.b16 %v1522, %v1519
  %v1688 = vpack.c.b16 %v1526, %v1523
  %v1689 = vpack.c.b16 %v1527, %v1524
  %v1690 = vpack.c.b16 %v1528, %v1525
  %v1691 = vpack.c.b16 %v1532, %v1529
  %v1692 = vpack.c.b16 %v1533, %v1530
  %v1693 = vpack.c.b16 %v1534, %v1531
  %v1694 = vpack.c.b16 %v1538, %v1535
  %v1695 = vpack.c.b16 %v1539, %v1536
  %v1696 = vpack.c.b16 %v1540, %v1537
  %v1697 = vpack.c.b16 %v1544, %v1541
  %v1698 = vpack.c.b16 %v1545, %v1542
  %v1699 = vpack.c.b16 %v1546, %v1543
  %v1700 = vpack.c.b16 %v1550, %v1547
  %v1701 = vpack.c.b16 %v1551, %v1548
  %v1702 = vpack.c.b16 %v1552, %v1549
  %v1703 = vpack.c.b16 %v1556, %v1553
  %v1704 = vpack.c.b16 %v1557, %v1554
  %v1705 = vpack.c.b16 %v1558, %v1555
  %v1706 = vpack.c.b16 %v1562, %v1559
  %v1707 = vpack.c.b16 %v1563, %v1560
  %v1708 = vpack.c.b16 %v1564, %v1561
  %v1709 = vpack.c.b16 %v1568, %v1565
  %v1710 = vpack.c.b16 %v1569, %v1566
  %v1711 = vpack.c.b16 %v1570, %v1567
  %v1712 = vpack.c.b16 %v1574, %v1571
  %v1713 = vpack.c.b16 %v1575, %v1572
  %v1714 = vpack.c.b16 %v1576, %v1573
  %v1715 = vpack.c.b16 %v1580, %v1577
  %v1716 = vpack.c.b16 %v1581, %v1578
  %v1717 = vpack.c.b16 %v1582, %v1579
  %v1718 = vpack.c.b16 %v1586, %v1583
  %v1719 = vpack.c.b16 %v1587, %v1584
  %v1720 = vpack.c.b16 %v1588, %v1585
  %v1721 = vpack.c.b16 %v1592, %v1589
  %v1722 = vpack.c.b16 %v1593, %v1590
  %v1723 = vpack.c.b16 %v1594, %v1591
  %v1724 = vpack.c.b16 %v1598, %v1595
  %v1725 = vpack.c.b16 %v1599, %v1596
  %v1726 = vpack.c.b16 %v1600, %v1597
  %v1727 = vpack.c.b16 %v1604, %v1601
  %v1728 = vpack.c.b16 %v1605, %v1602
  %v1729 = vpack.c.b16 %v1606, %v1603
  %v1730 = vpack.c.b16 %v1610, %v1607
  %v1731 = vpack.c.b16 %v1611, %v1608
  %v1732 = vpack.c.b16 %v1612, %v1609
  %v1733 = vpack.c.b16 %v1616, %v1613
  %v1734 = vpack.c.b16 %v1617, %v1614
  %v1735 = vpack.c.b16 %v1618, %v1615
  %v1736 = vpack.c.b16 %v1622, %v1619
  %v1737 = vpack.c.b16 %v1623, %v1620
  %v1738 = vpack.c.b16 %v1624, %v1621
  %v1739 = vpack.c.b16 %v1628, %v1625
  %v1740 = vpack.c.b16 %v1629, %v1626
  %v1741 = vpack.c.b16 %v1630, %v1627
  %v1742 = vpack.c.b16 %v1634, %v1631
  %v1743 = vpack.c.b16 %v1635, %v1632
  %v1744 = vpack.c.b16 %v1636, %v1633
  %v1745 = vpack.c.b16 %v1640, %v1637
  %v1746 = vpack.c.b16 %v1641, %v1638
  %v1747 = vpack.c.b16 %v1642, %v1639
  %v1748 = vpack.c.b16 %v1646, %v1643
  %v1749 = vpack.c.b16 %v1647, %v1644
  %v1750 = vpack.c.b16 %v1648, %v1645
  %v1751 = vpack.c.b16 %v1652, %v1649
  %v1752 = vpack.c.b16 %v1653, %v1650
  %v1753 = vpack.c.b16 %v1654, %v1651
  %v1754 = vpack.c.b16 %v1658, %v1655
  %v1755 = vpack.c.b16 %v1659, %v1656
  %v1756 = vpack.c.b16 %v1660, %v1657
  %1853 = vmatpush.bf16.msra.mxu0 %v1682
  %1854 = vmatpush.bf16.msra.mxu0 %v1679
  %1855 = vmatpush.bf16.msra.mxu0 %v1676
  %1856 = vmatpush.bf16.msra.mxu0 %v1673
  %1857 = vmatpush.bf16.msra.mxu0 %v1670
  %1858 = vmatpush.bf16.msra.mxu0 %v1667
  %1859 = vmatpush.bf16.msra.mxu0 %v1664
  %1860 = vmatpush.bf16.msra.mxu0 %v1661
  %1861 = vmatmul.bf16.gmra.mxu0 %v394
  %v1862 = vpop.f32.mrf.mxu0
  %v1863 = vadd.f32 %v1335, %v1862
  %v1864 = vpop.f32.mrf.mxu0
  %1865 = vdwg.mxu0
  %1866 = vmatpush.bf16.msra.mxu0 %v1706
  %1867 = vmatpush.bf16.msra.mxu0 %v1703
  %1868 = vmatpush.bf16.msra.mxu0 %v1700
  %1869 = vmatpush.bf16.msra.mxu0 %v1697
  %1870 = vmatpush.bf16.msra.mxu0 %v1694
  %1871 = vmatpush.bf16.msra.mxu0 %v1691
  %1872 = vmatpush.bf16.msra.mxu0 %v1688
  %1873 = vmatpush.bf16.msra.mxu0 %v1685
  %1874 = vmatmul.bf16.gmra.mxu0 %v395
  %v1875 = vpop.f32.mrf.mxu0
  %v1876 = vadd.f32 %v1863, %v1875
  %v1877 = vpop.f32.mrf.mxu0
  %1878 = vdwg.mxu0
  %1879 = vmatpush.bf16.msra.mxu0 %v1730
  %1880 = vmatpush.bf16.msra.mxu0 %v1727
  %1881 = vmatpush.bf16.msra.mxu0 %v1724
  %1882 = vmatpush.bf16.msra.mxu0 %v1721
  %1883 = vmatpush.bf16.msra.mxu0 %v1718
  %1884 = vmatpush.bf16.msra.mxu0 %v1715
  %1885 = vmatpush.bf16.msra.mxu0 %v1712
  %1886 = vmatpush.bf16.msra.mxu0 %v1709
  %1887 = vmatmul.bf16.gmra.mxu0 %v396
  %v1888 = vpop.f32.mrf.mxu0
  %v1889 = vadd.f32 %v1876, %v1888
  %v1890 = vpop.f32.mrf.mxu0
  %1891 = vdwg.mxu0
  %1892 = vmatpush.bf16.msra.mxu0 %v1754
  %1893 = vmatpush.bf16.msra.mxu0 %v1751
  %1894 = vmatpush.bf16.msra.mxu0 %v1748
  %1895 = vmatpush.bf16.msra.mxu0 %v1745
  %1896 = vmatpush.bf16.msra.mxu0 %v1742
  %1897 = vmatpush.bf16.msra.mxu0 %v1739
  %1898 = vmatpush.bf16.msra.mxu0 %v1736
  %1899 = vmatpush.bf16.msra.mxu0 %v1733
  %1900 = vmatmul.bf16.gmra.mxu0 %v397
  %v1901 = vpop.f32.mrf.mxu0
  %v1902 = vadd.f32 %v1889, %v1901
  %v1903 = vpop.f32.mrf.mxu0
  %1904 = vdwg.mxu0
  %1905 = vmatpush.bf16.msra.mxu0 %v1683
  %1906 = vmatpush.bf16.msra.mxu0 %v1680
  %1907 = vmatpush.bf16.msra.mxu0 %v1677
  %1908 = vmatpush.bf16.msra.mxu0 %v1674
  %1909 = vmatpush.bf16.msra.mxu0 %v1671
  %1910 = vmatpush.bf16.msra.mxu0 %v1668
  %1911 = vmatpush.bf16.msra.mxu0 %v1665
  %1912 = vmatpush.bf16.msra.mxu0 %v1662
  %1913 = vmatmul.bf16.gmra.mxu0 %v394
  %v1914 = vpop.f32.mrf.mxu0
  %v1915 = vadd.f32 %v1336, %v1914
  %v1916 = vpop.f32.mrf.mxu0
  %1917 = vdwg.mxu0
  %1918 = vmatpush.bf16.msra.mxu0 %v1707
  %1919 = vmatpush.bf16.msra.mxu0 %v1704
  %1920 = vmatpush.bf16.msra.mxu0 %v1701
  %1921 = vmatpush.bf16.msra.mxu0 %v1698
  %1922 = vmatpush.bf16.msra.mxu0 %v1695
  %1923 = vmatpush.bf16.msra.mxu0 %v1692
  %1924 = vmatpush.bf16.msra.mxu0 %v1689
  %1925 = vmatpush.bf16.msra.mxu0 %v1686
  %1926 = vmatmul.bf16.gmra.mxu0 %v395
  %v1927 = vpop.f32.mrf.mxu0
  %v1928 = vadd.f32 %v1915, %v1927
  %v1929 = vpop.f32.mrf.mxu0
  %1930 = vdwg.mxu0
  %1931 = vmatpush.bf16.msra.mxu0 %v1731
  %1932 = vmatpush.bf16.msra.mxu0 %v1728
  %1933 = vmatpush.bf16.msra.mxu0 %v1725
  %1934 = vmatpush.bf16.msra.mxu0 %v1722
  %1935 = vmatpush.bf16.msra.mxu0 %v1719
  %1936 = vmatpush.bf16.msra.mxu0 %v1716
  %1937 = vmatpush.bf16.msra.mxu0 %v1713
  %1938 = vmatpush.bf16.msra.mxu0 %v1710
  %1939 = vmatmul.bf16.gmra.mxu0 %v396
  %v1940 = vpop.f32.mrf.mxu0
  %v1941 = vadd.f32 %v1928, %v1940
  %v1942 = vpop.f32.mrf.mxu0
  %1943 = vdwg.mxu0
  %1944 = vmatpush.bf16.msra.mxu0 %v1755
  %1945 = vmatpush.bf16.msra.mxu0 %v1752
  %1946 = vmatpush.bf16.msra.mxu0 %v1749
  %1947 = vmatpush.bf16.msra.mxu0 %v1746
  %1948 = vmatpush.bf16.msra.mxu0 %v1743
  %1949 = vmatpush.bf16.msra.mxu0 %v1740
  %1950 = vmatpush.bf16.msra.mxu0 %v1737
  %1951 = vmatpush.bf16.msra.mxu0 %v1734
  %1952 = vmatmul.bf16.gmra.mxu0 %v397
  %v1953 = vpop.f32.mrf.mxu0
  %v1954 = vadd.f32 %v1941, %v1953
  %v1955 = vpop.f32.mrf.mxu0
  %1956 = vdwg.mxu0
  %1957 = vmatpush.bf16.msra.mxu0 %v1684
  %1958 = vmatpush.bf16.msra.mxu0 %v1681
  %1959 = vmatpush.bf16.msra.mxu0 %v1678
  %1960 = vmatpush.bf16.msra.mxu0 %v1675
  %1961 = vmatpush.bf16.msra.mxu0 %v1672
  %1962 = vmatpush.bf16.msra.mxu0 %v1669
  %1963 = vmatpush.bf16.msra.mxu0 %v1666
  %1964 = vmatpush.bf16.msra.mxu0 %v1663
  %1965 = vmatmul.bf16.gmra.mxu0 %v394
  %v1966 = vpop.f32.mrf.mxu0
  %v1967 = vadd.f32 %v1337, %v1966
  %v1968 = vpop.f32.mrf.mxu0
  %1969 = vdwg.mxu0
  %1970 = vmatpush.bf16.msra.mxu0 %v1708
  %1971 = vmatpush.bf16.msra.mxu0 %v1705
  %1972 = vmatpush.bf16.msra.mxu0 %v1702
  %1973 = vmatpush.bf16.msra.mxu0 %v1699
  %1974 = vmatpush.bf16.msra.mxu0 %v1696
  %1975 = vmatpush.bf16.msra.mxu0 %v1693
  %1976 = vmatpush.bf16.msra.mxu0 %v1690
  %1977 = vmatpush.bf16.msra.mxu0 %v1687
  %1978 = vmatmul.bf16.gmra.mxu0 %v395
  %v1979 = vpop.f32.mrf.mxu0
  %v1980 = vadd.f32 %v1967, %v1979
  %v1981 = vpop.f32.mrf.mxu0
  %1982 = vdwg.mxu0
  %1983 = vmatpush.bf16.msra.mxu0 %v1732
  %1984 = vmatpush.bf16.msra.mxu0 %v1729
  %1985 = vmatpush.bf16.msra.mxu0 %v1726
  %1986 = vmatpush.bf16.msra.mxu0 %v1723
  %1987 = vmatpush.bf16.msra.mxu0 %v1720
  %1988 = vmatpush.bf16.msra.mxu0 %v1717
  %1989 = vmatpush.bf16.msra.mxu0 %v1714
  %1990 = vmatpush.bf16.msra.mxu0 %v1711
  %1991 = vmatmul.bf16.gmra.mxu0 %v396
  %v1992 = vpop.f32.mrf.mxu0
  %v1993 = vadd.f32 %v1980, %v1992
  %v1994 = vpop.f32.mrf.mxu0
  %1995 = vdwg.mxu0
  %1996 = vmatpush.bf16.msra.mxu0 %v1756
  %1997 = vmatpush.bf16.msra.mxu0 %v1753
  %1998 = vmatpush.bf16.msra.mxu0 %v1750
  %1999 = vmatpush.bf16.msra.mxu0 %v1747
  %2000 = vmatpush.bf16.msra.mxu0 %v1744
  %2001 = vmatpush.bf16.msra.mxu0 %v1741
  %2002 = vmatpush.bf16.msra.mxu0 %v1738
  %2003 = vmatpush.bf16.msra.mxu0 %v1735
  %2004 = vmatmul.bf16.gmra.mxu0 %v397
  %v2005 = vpop.f32.mrf.mxu0
  %v2006 = vadd.f32 %v1993, %v2005
  %v2007 = vpop.f32.mrf.mxu0
  %2008 = vdwg.mxu0
  %v2009 = vmax.f32 %v1902, 0.0
  %v2010 = vmax.f32 %v1954, 0.0
  %v2011 = vmax.f32 %v2006, 0.0
  %v2012 = vld [vmem:[%s9] sm:$0x3f]
  %v2013 = vld [vmem:[%s10] sm:$0x1]
  %v2015 = vperm.slane %v2012, 0
  %v2016 = vperm.slane %v2012, 2
  %v2017 = vperm.slane %v2012, 4
  %v2021 = vperm.slane %v2015, 0
  %v2022 = vperm.slane %v2016, 0
  %v2023 = vperm.slane %v2017, 0
  %v2024 = vmul.f32 %v1202, %v2021
  %v2025 = vmul.f32 %v1203, %v2022
  %v2026 = vmul.f32 %v1204, %v2023
  %v2027 = vadd.f32 %v2024, %v2025
  %vm2028 = vcmask 359424
  %v2029 = vsel %vm2028, %v2026, 0.0
  %v2030 = vadd.f32 %v2027, %v2029
  %2031 = vadd.xlane.f32.xlu0 %v2030
  %v2032 = vpop.xlane.xlu0 %2031
  %v2034 = vperm.slane %v2013, 0
  %v2036 = vadd.f32 %v2032, %v2034
  %v2037 = vperm.slane %v2012, 1
  %v2038 = vperm.slane %v2012, 3
  %v2039 = vperm.slane %v2012, 5
  %v2043 = vperm.slane %v2037, 1
  %v2044 = vperm.slane %v2038, 1
  %v2045 = vperm.slane %v2039, 1
  %v2046 = vmul.f32 %v2009, %v2043
  %v2047 = vmul.f32 %v2010, %v2044
  %v2048 = vmul.f32 %v2011, %v2045
  %v2049 = vadd.f32 %v2046, %v2047
  %v2050 = vsel %vm2028, %v2048, 0.0
  %v2051 = vadd.f32 %v2049, %v2050
  %2052 = vadd.xlane.f32.xlu0 %v2051
  %v2053 = vpop.xlane.xlu0 %2052
  %v2054 = vadd.f32 %v2053, %v2034
  %2056 = vrot.lane.b32.xlu0 %v2054, 127
  %v2057 = vpop.permute.xlu0 %2056
  %v2059 = vsub.f32 %v2036, %v2057
  %v2060 = vand.u32 2147483647, %v2059
  %v2061 = vmul.f32 %v2060, 0.5
  %v2062 = vlaneseq
  %v2063 = vand.u32 %v2062, 127
  %vm2064 = vcmp.eq.s32.totalorder %v2063, 0
  %vm2065 = vcmp.eq.s32.totalorder %v2063, 1
  %vm2066 = vcmp.eq.s32.totalorder %v2063, 2
  %2068 = vset.pattern.permute.xlu0 0
  %2069 = vperm.xlu0 %2068, %v2061
  %v2070 = vpop.permute.xlu0 %2069
  %v2072 = vsel %vm2066, %v2070, 0.0
  %2073 = vset.pattern.permute.xlu0 1
  %2074 = vperm.xlu0 %2073, %v2054
  %v2075 = vpop.permute.xlu0 %2074
  %v2077 = vsel %vm2065, %v2075, %v2072
  %2079 = vset.pattern.permute.xlu0 0
  %2080 = vperm.xlu0 %2079, %v2036
  %v2081 = vpop.permute.xlu0 %2080
  %v2083 = vsel %vm2064, %v2081, %v2077
  %2084 = vst [vmem:[%s11] sm:$0xff] %v2083
  // Predicated region
  $region46: #{ensemble_critic_forward.1} parent=0 // pred_check
    _
  $region47: #{ensemble_critic_forward.1} parent=0 // pred_check_branch
    %2086 = sbr.rel (0) target = $region49
  $region48: #{ensemble_critic_forward.1} parent=0 // pred_region
    _
  $region49: #{ensemble_critic_forward.1} parent=0 // pred_fallthru
    _
  // Predicated region
  $region50: #{ensemble_critic_forward.1} parent=0 // pred_check
    _
  $region51: #{ensemble_critic_forward.1} parent=0 // pred_check_branch
    %2088 = sbr.rel (0) target = $region53
  $region52: #{ensemble_critic_forward.1} parent=0 // pred_region
    _
  $region53: #{ensemble_critic_forward.1} parent=0 // pred_fallthru
    _

</llo_original>
